<compile_context>
chip_gen: v6e
topology: v6e:2x2x1
jax: 0.10.0
libtpu: 0.0.40
codegen_flags: <defaults>
</compile_context>

<pallas_src>
import functools
import math

import jax
import jax.numpy as jnp
from jax import lax
from jax.experimental import pallas as pl
from jax.experimental.pallas import tpu as pltpu


# ----------------------------- fused Pallas kernel ---------------------------

def encoder_layer_kernel(x_ref, wqkv_ref, bqkv_ref, wo_ref, bo_ref,
                         ln1_g_ref, ln1_b_ref,
                         w1_ref, b1_ref, w2_ref, b2_ref,
                         ln2_g_ref, ln2_b_ref,
                         o_ref, attn_ref, *, n_heads, eps):
    bt, L, D = x_ref.shape                               # block = (Bt, L, D)
    dh = D // n_heads
    N = bt * L

    x = x_ref[...].reshape(N, D)                         # f32 residual path
    xb = x.astype(jnp.bfloat16)                          # bf16 operand for MXU

    # ---- fused QKV projection (1/sqrt(dh) already folded into Q cols) -------
    qkv = (jnp.dot(xb, wqkv_ref[...], preferred_element_type=jnp.float32)
           + bqkv_ref[...])                              # (N, 3D) f32
    q = qkv[:, 0 * D:1 * D].astype(jnp.bfloat16)
    k = qkv[:, 1 * D:2 * D].astype(jnp.bfloat16)
    v = qkv[:, 2 * D:3 * D].astype(jnp.bfloat16)

    # ---- non-causal multi-head softmax attention (attn_mask=None) -----------
    # Per-(batch, head) results are stored straight into the VMEM scratch slab
    # (no list + concatenate relayout).  QK^T via dot_general contracting the
    # last axes of both operands -> no explicit transpose.
    qk_dims = (((1,), (1,)), ((), ()))
    for b in range(bt):                                   # static, tiny trip counts
        r0, r1 = b * L, (b + 1) * L
        for h in range(n_heads):
            c0, c1 = h * dh, (h + 1) * dh
            s = lax.dot_general(q[r0:r1, c0:c1], k[r0:r1, c0:c1], qk_dims,
                                preferred_element_type=jnp.float32)    # (L, L)
            s = s - jnp.max(s, axis=-1, keepdims=True)
            p = jnp.exp(s)
            p = p * pl.reciprocal(jnp.sum(p, axis=-1, keepdims=True), approx=True)
            attn_ref[r0:r1, c0:c1] = jnp.dot(
                p.astype(jnp.bfloat16), v[r0:r1, c0:c1],
                preferred_element_type=jnp.float32)

    # ---- output projection + residual + LayerNorm1 (f32) --------------------
    new_x = (jnp.dot(attn_ref[...].astype(jnp.bfloat16), wo_ref[...],
                     preferred_element_type=jnp.float32) + bo_ref[...])
    z = x + new_x
    mu = jnp.mean(z, axis=-1, keepdims=True)
    var = jnp.mean((z - mu) ** 2, axis=-1, keepdims=True)
    x1 = (z - mu) * lax.rsqrt(var + eps) * ln1_g_ref[...] + ln1_b_ref[...]

    # ---- pointwise-conv FFN (Conv1d k=1 == linear) + residual + LayerNorm2 ---
    h1 = (jnp.dot(x1.astype(jnp.bfloat16), w1_ref[...],
                  preferred_element_type=jnp.float32) + b1_ref[...])
    h1 = jnp.maximum(h1, 0.0)                             # relu
    y = (jnp.dot(h1.astype(jnp.bfloat16), w2_ref[...],
                 preferred_element_type=jnp.float32) + b2_ref[...])
    z2 = x1 + y
    mu2 = jnp.mean(z2, axis=-1, keepdims=True)
    var2 = jnp.mean((z2 - mu2) ** 2, axis=-1, keepdims=True)
    out = (z2 - mu2) * lax.rsqrt(var2 + eps) * ln2_g_ref[...] + ln2_b_ref[...]
    o_ref[...] = out.reshape(bt, L, D)


# ----------------------------- host-side param prep ---------------------------

def prepare_params(p, n_heads):
    """One-time host transform: pack [Wq|Wk|Wv], fold 1/sqrt(dh) into the Q
    columns, cast the four large weight matrices to bf16 (MXU-native)."""
    D = p["wq"].shape[0]
    d_ff = p["w1"].shape[1]
    dh = D // n_heads
    scale = 1.0 / math.sqrt(dh)
    wqkv = jnp.concatenate([p["wq"] * scale, p["wk"], p["wv"]], axis=1)
    bqkv = jnp.concatenate([p["bq"] * scale, p["bk"], p["bv"]])
    return {
        "wqkv": wqkv.astype(jnp.bfloat16),
        "bqkv": bqkv.reshape(1, 3 * D).astype(jnp.float32),
        "wo": p["wo"].astype(jnp.bfloat16),
        "bo": p["bo"].reshape(1, D).astype(jnp.float32),
        "w1": p["w1"].astype(jnp.bfloat16),
        "b1": p["b1"].reshape(1, d_ff).astype(jnp.float32),
        "w2": p["w2"].astype(jnp.bfloat16),
        "b2": p["b2"].reshape(1, D).astype(jnp.float32),
        "ln1_g": p["ln1_g"].reshape(1, D).astype(jnp.float32),
        "ln1_b": p["ln1_b"].reshape(1, D).astype(jnp.float32),
        "ln2_g": p["ln2_g"].reshape(1, D).astype(jnp.float32),
        "ln2_b": p["ln2_b"].reshape(1, D).astype(jnp.float32),
    }


# --------------------------------- wrapper ------------------------------------

def encoder_layer(x, kp, n_heads, *, eps=1e-5, batch_tile=None):
    # TODO(synk): attention weights (attn) are not returned; the Informer default
    # (output_attention=False) makes them None in the PyTorch module as well.
    B, L, D = x.shape
    d_ff = kp["w1"].shape[1]
    if batch_tile is None:
        # Pack as many batch elements per grid step as possible while keeping
        # >= 2 "parallel" steps so both v7x TensorCores get work.
        batch_tile = B if B < 2 else max(1, B // 2)
    assert B % batch_tile == 0, "batch must be divisible by batch_tile"
    bt = batch_tile

    kern = functools.partial(encoder_layer_kernel, n_heads=n_heads, eps=eps)

    def const_spec(shape):
        # Grid-invariant weight block: DMA'd once, VMEM-resident across steps.
        return pl.BlockSpec(shape, lambda b, _s=len(shape): (0,) * _s)

    flops = (2 * B * L * D * 3 * D          # QKV projection
             + 4 * B * L * L * D            # QK^T + P@V over all heads
             + 2 * B * L * D * D            # output projection
             + 4 * B * L * D * d_ff)        # two FFN matmuls
    transcendentals = B * n_heads * L * L + 4 * B * L     # exp + rsqrt/recip
    bytes_accessed = (2 * B * L * D * 4                               # x + out
                      + (3 * D * D + D * D + 2 * D * d_ff) * 2        # bf16 weights
                      + (3 * D + D + d_ff + D + 4 * D) * 4)           # biases + LN

    return pl.pallas_call(
        kern,
        out_shape=jax.ShapeDtypeStruct((B, L, D), jnp.float32),
        grid=(B // bt,),
        in_specs=[
            pl.BlockSpec((bt, L, D), lambda b: (b, 0, 0)),   # x tile (Bt batches)
            const_spec((D, 3 * D)),      # wqkv   (bf16, scale folded into Q)
            const_spec((1, 3 * D)),      # bqkv
            const_spec((D, D)),          # wo     (bf16)
            const_spec((1, D)),          # bo
            const_spec((1, D)),          # ln1 gamma
            const_spec((1, D)),          # ln1 beta
            const_spec((D, d_ff)),       # w1 (conv1 k=1, bf16)
            const_spec((1, d_ff)),       # b1
            const_spec((d_ff, D)),       # w2 (conv2 k=1, bf16)
            const_spec((1, D)),          # b2
            const_spec((1, D)),          # ln2 gamma
            const_spec((1, D)),          # ln2 beta
        ],
        out_specs=pl.BlockSpec((bt, L, D), lambda b: (b, 0, 0)),
        scratch_shapes=[pltpu.VMEM((bt * L, D), jnp.float32)],   # attention output slab
        compiler_params=pltpu.CompilerParams(
            dimension_semantics=("parallel",),
            vmem_limit_bytes=32 * 1024 * 1024),
        cost_estimate=pl.CostEstimate(
            flops=flops, transcendentals=transcendentals,
            bytes_accessed=bytes_accessed),
    )(x,
      kp["wqkv"], kp["bqkv"], kp["wo"], kp["bo"],
      kp["ln1_g"], kp["ln1_b"],
      kp["w1"], kp["b1"], kp["w2"], kp["b2"],
      kp["ln2_g"], kp["ln2_b"])


# -------------------------- reference (pure JAX, f32) --------------------------

def _layer_norm(z, g, b, eps):
    mu = jnp.mean(z, -1, keepdims=True)
    var = jnp.mean((z - mu) ** 2, -1, keepdims=True)
    return (z - mu) / jnp.sqrt(var + eps) * g + b


def encoder_layer_ref(x, p, n_heads, eps=1e-5):
    B, L, D = x.shape
    dh = D // n_heads
    q = (x @ p["wq"] + p["bq"]).reshape(B, L, n_heads, dh)
    k = (x @ p["wk"] + p["bk"]).reshape(B, L, n_heads, dh)
    v = (x @ p["wv"] + p["bv"]).reshape(B, L, n_heads, dh)
    s = jnp.einsum("blhe,bshe->bhls", q, k) / math.sqrt(dh)
    a = jax.nn.softmax(s, axis=-1)
    o = jnp.einsum("bhls,bshd->blhd", a, v).reshape(B, L, D)
    new_x = o @ p["wo"] + p["bo"]
    x1 = _layer_norm(x + new_x, p["ln1_g"], p["ln1_b"], eps)
    y = jnp.maximum(x1 @ p["w1"] + p["b1"], 0.0) @ p["w2"] + p["b2"]
    return _layer_norm(x1 + y, p["ln2_g"], p["ln2_b"], eps)


# ----------------------------------- main --------------------------------------

if __name__ == "__main__":
    B, L = 4, 8                      # batch, sequence length (small test shapes)
    d_model, n_heads = 32, 4
    d_ff = 4 * d_model               # = 128

    key = jax.random.PRNGKey(0)
    ks = jax.random.split(key, 13)
    x = jax.random.normal(ks[0], (B, L, d_model), jnp.float32)

    s = 1.0 / math.sqrt(d_model)
    raw = {
        "wq": jax.random.normal(ks[1], (d_model, d_model), jnp.float32) * s,
        "wk": jax.random.normal(ks[2], (d_model, d_model), jnp.float32) * s,
        "wv": jax.random.normal(ks[3], (d_model, d_model), jnp.float32) * s,
        "bq": jax.random.normal(ks[4], (d_model,), jnp.float32) * 0.01,
        "bk": jax.random.normal(ks[5], (d_model,), jnp.float32) * 0.01,
        "bv": jax.random.normal(ks[6], (d_model,), jnp.float32) * 0.01,
        "wo": jax.random.normal(ks[7], (d_model, d_model), jnp.float32) * s,
        "bo": jax.random.normal(ks[8], (d_model,), jnp.float32) * 0.01,
        # conv1: Conv1d(d_model, d_ff, 1) stored transposed as (d_model, d_ff)
        "w1": jax.random.normal(ks[9], (d_model, d_ff), jnp.float32) * s,
        "b1": jax.random.normal(ks[10], (d_ff,), jnp.float32) * 0.01,
        # conv2: Conv1d(d_ff, d_model, 1) stored transposed as (d_ff, d_model)
        "w2": jax.random.normal(ks[11], (d_ff, d_model), jnp.float32) / math.sqrt(d_ff),
        "b2": jax.random.normal(ks[12], (d_model,), jnp.float32) * 0.01,
        "ln1_g": jnp.ones((d_model,), jnp.float32),
        "ln1_b": jnp.zeros((d_model,), jnp.float32),
        "ln2_g": jnp.ones((d_model,), jnp.float32),
        "ln2_b": jnp.zeros((d_model,), jnp.float32),
    }

    kparams = prepare_params(raw, n_heads)
    out = jax.block_until_ready(encoder_layer(x, kparams, n_heads))

    ref = encoder_layer_ref(x, raw, n_heads)
    assert out.shape == (B, L, d_model)
    # bf16 MXU operands (f32 accumulation) + approx softmax reciprocal -> compare
    # against the pure-f32 reference with a correspondingly relaxed tolerance.
    assert jnp.allclose(out, ref, rtol=5e-2, atol=5e-2), "mismatch vs JAX f32 reference"

    print("KERNEL_OK")
</pallas_src>

<mosaic_0001>
module attributes {stable_mosaic.version = 11 : i64} {
  func.func @encoder_layer_kernel(%arg0: i32, %arg1: memref<2x8x32xf32, #tpu.memory_space<vmem>>, %arg2: memref<32x96xbf16, #tpu.memory_space<vmem>>, %arg3: memref<1x96xf32, #tpu.memory_space<vmem>>, %arg4: memref<32x32xbf16, #tpu.memory_space<vmem>>, %arg5: memref<1x32xf32, #tpu.memory_space<vmem>>, %arg6: memref<1x32xf32, #tpu.memory_space<vmem>>, %arg7: memref<1x32xf32, #tpu.memory_space<vmem>>, %arg8: memref<32x128xbf16, #tpu.memory_space<vmem>>, %arg9: memref<1x128xf32, #tpu.memory_space<vmem>>, %arg10: memref<128x32xbf16, #tpu.memory_space<vmem>>, %arg11: memref<1x32xf32, #tpu.memory_space<vmem>>, %arg12: memref<1x32xf32, #tpu.memory_space<vmem>>, %arg13: memref<1x32xf32, #tpu.memory_space<vmem>>, %arg14: memref<2x8x32xf32, #tpu.memory_space<vmem>>, %arg15: memref<16x32xf32, #tpu.memory_space<vmem>>) attributes {dimension_semantics = [#tpu.dimension_semantics<parallel>], iteration_bounds = array<i64: 2>, scalar_prefetch = 0 : i64, scratch_operands = 1 : i64, tpu.core_type = #tpu.core_type<tc>, window_params = [{transform_indices = @transform_0, window_bounds = array<i64: 2, 8, 32>}, {pipeline_mode = #tpu.pipeline_mode<synchronous>, transform_indices = @transform_1, window_bounds = array<i64: 32, 96>}, {pipeline_mode = #tpu.pipeline_mode<synchronous>, transform_indices = @transform_2, window_bounds = array<i64: 1, 96>}, {pipeline_mode = #tpu.pipeline_mode<synchronous>, transform_indices = @transform_3, window_bounds = array<i64: 32, 32>}, {pipeline_mode = #tpu.pipeline_mode<synchronous>, transform_indices = @transform_4, window_bounds = array<i64: 1, 32>}, {pipeline_mode = #tpu.pipeline_mode<synchronous>, transform_indices = @transform_5, window_bounds = array<i64: 1, 32>}, {pipeline_mode = #tpu.pipeline_mode<synchronous>, transform_indices = @transform_6, window_bounds = array<i64: 1, 32>}, {pipeline_mode = #tpu.pipeline_mode<synchronous>, transform_indices = @transform_7, window_bounds = array<i64: 32, 128>}, {pipeline_mode = #tpu.pipeline_mode<synchronous>, transform_indices = @transform_8, window_bounds = array<i64: 1, 128>}, {pipeline_mode = #tpu.pipeline_mode<synchronous>, transform_indices = @transform_9, window_bounds = array<i64: 128, 32>}, {pipeline_mode = #tpu.pipeline_mode<synchronous>, transform_indices = @transform_10, window_bounds = array<i64: 1, 32>}, {pipeline_mode = #tpu.pipeline_mode<synchronous>, transform_indices = @transform_11, window_bounds = array<i64: 1, 32>}, {pipeline_mode = #tpu.pipeline_mode<synchronous>, transform_indices = @transform_12, window_bounds = array<i64: 1, 32>}, {transform_indices = @transform_13, window_bounds = array<i64: 2, 8, 32>}]} {
    %c0 = arith.constant 0 : index
    %c0_0 = arith.constant 0 : index
    %c0_1 = arith.constant 0 : index
    %0 = vector.load %arg1[%c0, %c0_0, %c0_1] : memref<2x8x32xf32, #tpu.memory_space<vmem>>, vector<2x8x32xf32>
    %1 = vector.shape_cast %0 : vector<2x8x32xf32> to vector<16x32xf32>
    %2 = arith.truncf %1 : vector<16x32xf32> to vector<16x32xbf16>
    %c0_2 = arith.constant 0 : index
    %c0_3 = arith.constant 0 : index
    %3 = vector.load %arg2[%c0_2, %c0_3] : memref<32x96xbf16, #tpu.memory_space<vmem>>, vector<32x96xbf16>
    %cst = arith.constant dense<0.000000e+00> : vector<16x96xf32>
    %4 = tpu.matmul %2, %3, %cst {dimension_numbers = #tpu.dot_dimension_numbers<[1], [0], [0], [1], [0, 0, 1, 1], [], []>} : vector<16x32xbf16>, vector<32x96xbf16>, vector<16x96xf32> -> vector<16x96xf32>
    %c0_4 = arith.constant 0 : index
    %c0_5 = arith.constant 0 : index
    %5 = vector.load %arg3[%c0_4, %c0_5] : memref<1x96xf32, #tpu.memory_space<vmem>>, vector<1x96xf32>
    %6 = vector.broadcast %5 : vector<1x96xf32> to vector<16x96xf32>
    %7 = arith.addf %4, %6 : vector<16x96xf32>
    %8 = vector.extract_strided_slice %7 {offsets = [0, 0], sizes = [16, 32], strides = [1, 1]} : vector<16x96xf32> to vector<16x32xf32>
    %9 = arith.truncf %8 : vector<16x32xf32> to vector<16x32xbf16>
    %10 = vector.extract_strided_slice %7 {offsets = [0, 32], sizes = [16, 32], strides = [1, 1]} : vector<16x96xf32> to vector<16x32xf32>
    %11 = arith.truncf %10 : vector<16x32xf32> to vector<16x32xbf16>
    %12 = vector.extract_strided_slice %7 {offsets = [0, 64], sizes = [16, 32], strides = [1, 1]} : vector<16x96xf32> to vector<16x32xf32>
    %13 = arith.truncf %12 : vector<16x32xf32> to vector<16x32xbf16>
    %14 = vector.extract_strided_slice %9 {offsets = [0, 0], sizes = [8, 8], strides = [1, 1]} : vector<16x32xbf16> to vector<8x8xbf16>
    %15 = vector.extract_strided_slice %11 {offsets = [0, 0], sizes = [8, 8], strides = [1, 1]} : vector<16x32xbf16> to vector<8x8xbf16>
    %cst_6 = arith.constant dense<0.000000e+00> : vector<8x8xf32>
    %16 = tpu.matmul %14, %15, %cst_6 {dimension_numbers = #tpu.dot_dimension_numbers<[1], [1], [0], [0], [0, 0, 1, 0], [], []>} : vector<8x8xbf16>, vector<8x8xbf16>, vector<8x8xf32> -> vector<8x8xf32>
    %cst_7 = arith.constant dense<0xFF800000> : vector<8xf32>
    %17 = vector.multi_reduction <maximumf>, %16, %cst_7 [1] : vector<8x8xf32> to vector<8xf32>
    %18 = vector.shape_cast %17 : vector<8xf32> to vector<8x1xf32>
    %19 = vector.broadcast %18 : vector<8x1xf32> to vector<8x8xf32>
    %20 = arith.subf %16, %19 : vector<8x8xf32>
    %21 = math.exp %20 : vector<8x8xf32>
    %cst_8 = arith.constant dense<0.000000e+00> : vector<8xf32>
    %22 = vector.multi_reduction <add>, %21, %cst_8 [1] : vector<8x8xf32> to vector<8xf32>
    %23 = vector.shape_cast %22 : vector<8xf32> to vector<8x1xf32>
    %24 = tpu.reciprocal %23 {approx = true} : vector<8x1xf32> -> vector<8x1xf32>
    %25 = vector.broadcast %24 : vector<8x1xf32> to vector<8x8xf32>
    %26 = arith.mulf %21, %25 : vector<8x8xf32>
    %27 = arith.truncf %26 : vector<8x8xf32> to vector<8x8xbf16>
    %28 = vector.extract_strided_slice %13 {offsets = [0, 0], sizes = [8, 8], strides = [1, 1]} : vector<16x32xbf16> to vector<8x8xbf16>
    %cst_9 = arith.constant dense<0.000000e+00> : vector<8x8xf32>
    %29 = tpu.matmul %27, %28, %cst_9 {dimension_numbers = #tpu.dot_dimension_numbers<[1], [0], [0], [1], [0, 0, 1, 1], [], []>} : vector<8x8xbf16>, vector<8x8xbf16>, vector<8x8xf32> -> vector<8x8xf32>
    %c0_10 = arith.constant 0 : index
    %c0_11 = arith.constant 0 : index
    %30 = vector.load %arg15[%c0_10, %c0_11] : memref<16x32xf32, #tpu.memory_space<vmem>>, vector<8x8xf32>
    tpu.vector_store %arg15[%c0_10, %c0_11], %29 {strides = array<i32>} : memref<16x32xf32, #tpu.memory_space<vmem>>, vector<8x8xf32>,
    %31 = vector.extract_strided_slice %9 {offsets = [0, 8], sizes = [8, 8], strides = [1, 1]} : vector<16x32xbf16> to vector<8x8xbf16>
    %32 = vector.extract_strided_slice %11 {offsets = [0, 8], sizes = [8, 8], strides = [1, 1]} : vector<16x32xbf16> to vector<8x8xbf16>
    %cst_12 = arith.constant dense<0.000000e+00> : vector<8x8xf32>
    %33 = tpu.matmul %31, %32, %cst_12 {dimension_numbers = #tpu.dot_dimension_numbers<[1], [1], [0], [0], [0, 0, 1, 0], [], []>} : vector<8x8xbf16>, vector<8x8xbf16>, vector<8x8xf32> -> vector<8x8xf32>
    %cst_13 = arith.constant dense<0xFF800000> : vector<8xf32>
    %34 = vector.multi_reduction <maximumf>, %33, %cst_13 [1] : vector<8x8xf32> to vector<8xf32>
    %35 = vector.shape_cast %34 : vector<8xf32> to vector<8x1xf32>
    %36 = vector.broadcast %35 : vector<8x1xf32> to vector<8x8xf32>
    %37 = arith.subf %33, %36 : vector<8x8xf32>
    %38 = math.exp %37 : vector<8x8xf32>
    %cst_14 = arith.constant dense<0.000000e+00> : vector<8xf32>
    %39 = vector.multi_reduction <add>, %38, %cst_14 [1] : vector<8x8xf32> to vector<8xf32>
    %40 = vector.shape_cast %39 : vector<8xf32> to vector<8x1xf32>
    %41 = tpu.reciprocal %40 {approx = true} : vector<8x1xf32> -> vector<8x1xf32>
    %42 = vector.broadcast %41 : vector<8x1xf32> to vector<8x8xf32>
    %43 = arith.mulf %38, %42 : vector<8x8xf32>
    %44 = arith.truncf %43 : vector<8x8xf32> to vector<8x8xbf16>
    %45 = vector.extract_strided_slice %13 {offsets = [0, 8], sizes = [8, 8], strides = [1, 1]} : vector<16x32xbf16> to vector<8x8xbf16>
    %cst_15 = arith.constant dense<0.000000e+00> : vector<8x8xf32>
    %46 = tpu.matmul %44, %45, %cst_15 {dimension_numbers = #tpu.dot_dimension_numbers<[1], [0], [0], [1], [0, 0, 1, 1], [], []>} : vector<8x8xbf16>, vector<8x8xbf16>, vector<8x8xf32> -> vector<8x8xf32>
    %c0_16 = arith.constant 0 : index
    %c8 = arith.constant 8 : index
    %47 = vector.load %arg15[%c0_16, %c8] : memref<16x32xf32, #tpu.memory_space<vmem>>, vector<8x8xf32>
    tpu.vector_store %arg15[%c0_16, %c8], %46 {strides = array<i32>} : memref<16x32xf32, #tpu.memory_space<vmem>>, vector<8x8xf32>,
    %48 = vector.extract_strided_slice %9 {offsets = [0, 16], sizes = [8, 8], strides = [1, 1]} : vector<16x32xbf16> to vector<8x8xbf16>
    %49 = vector.extract_strided_slice %11 {offsets = [0, 16], sizes = [8, 8], strides = [1, 1]} : vector<16x32xbf16> to vector<8x8xbf16>
    %cst_17 = arith.constant dense<0.000000e+00> : vector<8x8xf32>
    %50 = tpu.matmul %48, %49, %cst_17 {dimension_numbers = #tpu.dot_dimension_numbers<[1], [1], [0], [0], [0, 0, 1, 0], [], []>} : vector<8x8xbf16>, vector<8x8xbf16>, vector<8x8xf32> -> vector<8x8xf32>
    %cst_18 = arith.constant dense<0xFF800000> : vector<8xf32>
    %51 = vector.multi_reduction <maximumf>, %50, %cst_18 [1] : vector<8x8xf32> to vector<8xf32>
    %52 = vector.shape_cast %51 : vector<8xf32> to vector<8x1xf32>
    %53 = vector.broadcast %52 : vector<8x1xf32> to vector<8x8xf32>
    %54 = arith.subf %50, %53 : vector<8x8xf32>
    %55 = math.exp %54 : vector<8x8xf32>
    %cst_19 = arith.constant dense<0.000000e+00> : vector<8xf32>
    %56 = vector.multi_reduction <add>, %55, %cst_19 [1] : vector<8x8xf32> to vector<8xf32>
    %57 = vector.shape_cast %56 : vector<8xf32> to vector<8x1xf32>
    %58 = tpu.reciprocal %57 {approx = true} : vector<8x1xf32> -> vector<8x1xf32>
    %59 = vector.broadcast %58 : vector<8x1xf32> to vector<8x8xf32>
    %60 = arith.mulf %55, %59 : vector<8x8xf32>
    %61 = arith.truncf %60 : vector<8x8xf32> to vector<8x8xbf16>
    %62 = vector.extract_strided_slice %13 {offsets = [0, 16], sizes = [8, 8], strides = [1, 1]} : vector<16x32xbf16> to vector<8x8xbf16>
    %cst_20 = arith.constant dense<0.000000e+00> : vector<8x8xf32>
    %63 = tpu.matmul %61, %62, %cst_20 {dimension_numbers = #tpu.dot_dimension_numbers<[1], [0], [0], [1], [0, 0, 1, 1], [], []>} : vector<8x8xbf16>, vector<8x8xbf16>, vector<8x8xf32> -> vector<8x8xf32>
    %c0_21 = arith.constant 0 : index
    %c16 = arith.constant 16 : index
    %64 = vector.load %arg15[%c0_21, %c16] : memref<16x32xf32, #tpu.memory_space<vmem>>, vector<8x8xf32>
    tpu.vector_store %arg15[%c0_21, %c16], %63 {strides = array<i32>} : memref<16x32xf32, #tpu.memory_space<vmem>>, vector<8x8xf32>,
    %65 = vector.extract_strided_slice %9 {offsets = [0, 24], sizes = [8, 8], strides = [1, 1]} : vector<16x32xbf16> to vector<8x8xbf16>
    %66 = vector.extract_strided_slice %11 {offsets = [0, 24], sizes = [8, 8], strides = [1, 1]} : vector<16x32xbf16> to vector<8x8xbf16>
    %cst_22 = arith.constant dense<0.000000e+00> : vector<8x8xf32>
    %67 = tpu.matmul %65, %66, %cst_22 {dimension_numbers = #tpu.dot_dimension_numbers<[1], [1], [0], [0], [0, 0, 1, 0], [], []>} : vector<8x8xbf16>, vector<8x8xbf16>, vector<8x8xf32> -> vector<8x8xf32>
    %cst_23 = arith.constant dense<0xFF800000> : vector<8xf32>
    %68 = vector.multi_reduction <maximumf>, %67, %cst_23 [1] : vector<8x8xf32> to vector<8xf32>
    %69 = vector.shape_cast %68 : vector<8xf32> to vector<8x1xf32>
    %70 = vector.broadcast %69 : vector<8x1xf32> to vector<8x8xf32>
    %71 = arith.subf %67, %70 : vector<8x8xf32>
    %72 = math.exp %71 : vector<8x8xf32>
    %cst_24 = arith.constant dense<0.000000e+00> : vector<8xf32>
    %73 = vector.multi_reduction <add>, %72, %cst_24 [1] : vector<8x8xf32> to vector<8xf32>
    %74 = vector.shape_cast %73 : vector<8xf32> to vector<8x1xf32>
    %75 = tpu.reciprocal %74 {approx = true} : vector<8x1xf32> -> vector<8x1xf32>
    %76 = vector.broadcast %75 : vector<8x1xf32> to vector<8x8xf32>
    %77 = arith.mulf %72, %76 : vector<8x8xf32>
    %78 = arith.truncf %77 : vector<8x8xf32> to vector<8x8xbf16>
    %79 = vector.extract_strided_slice %13 {offsets = [0, 24], sizes = [8, 8], strides = [1, 1]} : vector<16x32xbf16> to vector<8x8xbf16>
    %cst_25 = arith.constant dense<0.000000e+00> : vector<8x8xf32>
    %80 = tpu.matmul %78, %79, %cst_25 {dimension_numbers = #tpu.dot_dimension_numbers<[1], [0], [0], [1], [0, 0, 1, 1], [], []>} : vector<8x8xbf16>, vector<8x8xbf16>, vector<8x8xf32> -> vector<8x8xf32>
    %c0_26 = arith.constant 0 : index
    %c24 = arith.constant 24 : index
    %81 = vector.load %arg15[%c0_26, %c24] : memref<16x32xf32, #tpu.memory_space<vmem>>, vector<8x8xf32>
    tpu.vector_store %arg15[%c0_26, %c24], %80 {strides = array<i32>} : memref<16x32xf32, #tpu.memory_space<vmem>>, vector<8x8xf32>,
    %82 = vector.extract_strided_slice %9 {offsets = [8, 0], sizes = [8, 8], strides = [1, 1]} : vector<16x32xbf16> to vector<8x8xbf16>
    %83 = vector.extract_strided_slice %11 {offsets = [8, 0], sizes = [8, 8], strides = [1, 1]} : vector<16x32xbf16> to vector<8x8xbf16>
    %cst_27 = arith.constant dense<0.000000e+00> : vector<8x8xf32>
    %84 = tpu.matmul %82, %83, %cst_27 {dimension_numbers = #tpu.dot_dimension_numbers<[1], [1], [0], [0], [0, 0, 1, 0], [], []>} : vector<8x8xbf16>, vector<8x8xbf16>, vector<8x8xf32> -> vector<8x8xf32>
    %cst_28 = arith.constant dense<0xFF800000> : vector<8xf32>
    %85 = vector.multi_reduction <maximumf>, %84, %cst_28 [1] : vector<8x8xf32> to vector<8xf32>
    %86 = vector.shape_cast %85 : vector<8xf32> to vector<8x1xf32>
    %87 = vector.broadcast %86 : vector<8x1xf32> to vector<8x8xf32>
    %88 = arith.subf %84, %87 : vector<8x8xf32>
    %89 = math.exp %88 : vector<8x8xf32>
    %cst_29 = arith.constant dense<0.000000e+00> : vector<8xf32>
    %90 = vector.multi_reduction <add>, %89, %cst_29 [1] : vector<8x8xf32> to vector<8xf32>
    %91 = vector.shape_cast %90 : vector<8xf32> to vector<8x1xf32>
    %92 = tpu.reciprocal %91 {approx = true} : vector<8x1xf32> -> vector<8x1xf32>
    %93 = vector.broadcast %92 : vector<8x1xf32> to vector<8x8xf32>
    %94 = arith.mulf %89, %93 : vector<8x8xf32>
    %95 = arith.truncf %94 : vector<8x8xf32> to vector<8x8xbf16>
    %96 = vector.extract_strided_slice %13 {offsets = [8, 0], sizes = [8, 8], strides = [1, 1]} : vector<16x32xbf16> to vector<8x8xbf16>
    %cst_30 = arith.constant dense<0.000000e+00> : vector<8x8xf32>
    %97 = tpu.matmul %95, %96, %cst_30 {dimension_numbers = #tpu.dot_dimension_numbers<[1], [0], [0], [1], [0, 0, 1, 1], [], []>} : vector<8x8xbf16>, vector<8x8xbf16>, vector<8x8xf32> -> vector<8x8xf32>
    %c8_31 = arith.constant 8 : index
    %c0_32 = arith.constant 0 : index
    %98 = vector.load %arg15[%c8_31, %c0_32] : memref<16x32xf32, #tpu.memory_space<vmem>>, vector<8x8xf32>
    tpu.vector_store %arg15[%c8_31, %c0_32], %97 {strides = array<i32>} : memref<16x32xf32, #tpu.memory_space<vmem>>, vector<8x8xf32>,
    %99 = vector.extract_strided_slice %9 {offsets = [8, 8], sizes = [8, 8], strides = [1, 1]} : vector<16x32xbf16> to vector<8x8xbf16>
    %100 = vector.extract_strided_slice %11 {offsets = [8, 8], sizes = [8, 8], strides = [1, 1]} : vector<16x32xbf16> to vector<8x8xbf16>
    %cst_33 = arith.constant dense<0.000000e+00> : vector<8x8xf32>
    %101 = tpu.matmul %99, %100, %cst_33 {dimension_numbers = #tpu.dot_dimension_numbers<[1], [1], [0], [0], [0, 0, 1, 0], [], []>} : vector<8x8xbf16>, vector<8x8xbf16>, vector<8x8xf32> -> vector<8x8xf32>
    %cst_34 = arith.constant dense<0xFF800000> : vector<8xf32>
    %102 = vector.multi_reduction <maximumf>, %101, %cst_34 [1] : vector<8x8xf32> to vector<8xf32>
    %103 = vector.shape_cast %102 : vector<8xf32> to vector<8x1xf32>
    %104 = vector.broadcast %103 : vector<8x1xf32> to vector<8x8xf32>
    %105 = arith.subf %101, %104 : vector<8x8xf32>
    %106 = math.exp %105 : vector<8x8xf32>
    %cst_35 = arith.constant dense<0.000000e+00> : vector<8xf32>
    %107 = vector.multi_reduction <add>, %106, %cst_35 [1] : vector<8x8xf32> to vector<8xf32>
    %108 = vector.shape_cast %107 : vector<8xf32> to vector<8x1xf32>
    %109 = tpu.reciprocal %108 {approx = true} : vector<8x1xf32> -> vector<8x1xf32>
    %110 = vector.broadcast %109 : vector<8x1xf32> to vector<8x8xf32>
    %111 = arith.mulf %106, %110 : vector<8x8xf32>
    %112 = arith.truncf %111 : vector<8x8xf32> to vector<8x8xbf16>
    %113 = vector.extract_strided_slice %13 {offsets = [8, 8], sizes = [8, 8], strides = [1, 1]} : vector<16x32xbf16> to vector<8x8xbf16>
    %cst_36 = arith.constant dense<0.000000e+00> : vector<8x8xf32>
    %114 = tpu.matmul %112, %113, %cst_36 {dimension_numbers = #tpu.dot_dimension_numbers<[1], [0], [0], [1], [0, 0, 1, 1], [], []>} : vector<8x8xbf16>, vector<8x8xbf16>, vector<8x8xf32> -> vector<8x8xf32>
    %c8_37 = arith.constant 8 : index
    %c8_38 = arith.constant 8 : index
    %115 = vector.load %arg15[%c8_37, %c8_38] : memref<16x32xf32, #tpu.memory_space<vmem>>, vector<8x8xf32>
    tpu.vector_store %arg15[%c8_37, %c8_38], %114 {strides = array<i32>} : memref<16x32xf32, #tpu.memory_space<vmem>>, vector<8x8xf32>,
    %116 = vector.extract_strided_slice %9 {offsets = [8, 16], sizes = [8, 8], strides = [1, 1]} : vector<16x32xbf16> to vector<8x8xbf16>
    %117 = vector.extract_strided_slice %11 {offsets = [8, 16], sizes = [8, 8], strides = [1, 1]} : vector<16x32xbf16> to vector<8x8xbf16>
    %cst_39 = arith.constant dense<0.000000e+00> : vector<8x8xf32>
    %118 = tpu.matmul %116, %117, %cst_39 {dimension_numbers = #tpu.dot_dimension_numbers<[1], [1], [0], [0], [0, 0, 1, 0], [], []>} : vector<8x8xbf16>, vector<8x8xbf16>, vector<8x8xf32> -> vector<8x8xf32>
    %cst_40 = arith.constant dense<0xFF800000> : vector<8xf32>
    %119 = vector.multi_reduction <maximumf>, %118, %cst_40 [1] : vector<8x8xf32> to vector<8xf32>
    %120 = vector.shape_cast %119 : vector<8xf32> to vector<8x1xf32>
    %121 = vector.broadcast %120 : vector<8x1xf32> to vector<8x8xf32>
    %122 = arith.subf %118, %121 : vector<8x8xf32>
    %123 = math.exp %122 : vector<8x8xf32>
    %cst_41 = arith.constant dense<0.000000e+00> : vector<8xf32>
    %124 = vector.multi_reduction <add>, %123, %cst_41 [1] : vector<8x8xf32> to vector<8xf32>
    %125 = vector.shape_cast %124 : vector<8xf32> to vector<8x1xf32>
    %126 = tpu.reciprocal %125 {approx = true} : vector<8x1xf32> -> vector<8x1xf32>
    %127 = vector.broadcast %126 : vector<8x1xf32> to vector<8x8xf32>
    %128 = arith.mulf %123, %127 : vector<8x8xf32>
    %129 = arith.truncf %128 : vector<8x8xf32> to vector<8x8xbf16>
    %130 = vector.extract_strided_slice %13 {offsets = [8, 16], sizes = [8, 8], strides = [1, 1]} : vector<16x32xbf16> to vector<8x8xbf16>
    %cst_42 = arith.constant dense<0.000000e+00> : vector<8x8xf32>
    %131 = tpu.matmul %129, %130, %cst_42 {dimension_numbers = #tpu.dot_dimension_numbers<[1], [0], [0], [1], [0, 0, 1, 1], [], []>} : vector<8x8xbf16>, vector<8x8xbf16>, vector<8x8xf32> -> vector<8x8xf32>
    %c8_43 = arith.constant 8 : index
    %c16_44 = arith.constant 16 : index
    %132 = vector.load %arg15[%c8_43, %c16_44] : memref<16x32xf32, #tpu.memory_space<vmem>>, vector<8x8xf32>
    tpu.vector_store %arg15[%c8_43, %c16_44], %131 {strides = array<i32>} : memref<16x32xf32, #tpu.memory_space<vmem>>, vector<8x8xf32>,
    %133 = vector.extract_strided_slice %9 {offsets = [8, 24], sizes = [8, 8], strides = [1, 1]} : vector<16x32xbf16> to vector<8x8xbf16>
    %134 = vector.extract_strided_slice %11 {offsets = [8, 24], sizes = [8, 8], strides = [1, 1]} : vector<16x32xbf16> to vector<8x8xbf16>
    %cst_45 = arith.constant dense<0.000000e+00> : vector<8x8xf32>
    %135 = tpu.matmul %133, %134, %cst_45 {dimension_numbers = #tpu.dot_dimension_numbers<[1], [1], [0], [0], [0, 0, 1, 0], [], []>} : vector<8x8xbf16>, vector<8x8xbf16>, vector<8x8xf32> -> vector<8x8xf32>
    %cst_46 = arith.constant dense<0xFF800000> : vector<8xf32>
    %136 = vector.multi_reduction <maximumf>, %135, %cst_46 [1] : vector<8x8xf32> to vector<8xf32>
    %137 = vector.shape_cast %136 : vector<8xf32> to vector<8x1xf32>
    %138 = vector.broadcast %137 : vector<8x1xf32> to vector<8x8xf32>
    %139 = arith.subf %135, %138 : vector<8x8xf32>
    %140 = math.exp %139 : vector<8x8xf32>
    %cst_47 = arith.constant dense<0.000000e+00> : vector<8xf32>
    %141 = vector.multi_reduction <add>, %140, %cst_47 [1] : vector<8x8xf32> to vector<8xf32>
    %142 = vector.shape_cast %141 : vector<8xf32> to vector<8x1xf32>
    %143 = tpu.reciprocal %142 {approx = true} : vector<8x1xf32> -> vector<8x1xf32>
    %144 = vector.broadcast %143 : vector<8x1xf32> to vector<8x8xf32>
    %145 = arith.mulf %140, %144 : vector<8x8xf32>
    %146 = arith.truncf %145 : vector<8x8xf32> to vector<8x8xbf16>
    %147 = vector.extract_strided_slice %13 {offsets = [8, 24], sizes = [8, 8], strides = [1, 1]} : vector<16x32xbf16> to vector<8x8xbf16>
    %cst_48 = arith.constant dense<0.000000e+00> : vector<8x8xf32>
    %148 = tpu.matmul %146, %147, %cst_48 {dimension_numbers = #tpu.dot_dimension_numbers<[1], [0], [0], [1], [0, 0, 1, 1], [], []>} : vector<8x8xbf16>, vector<8x8xbf16>, vector<8x8xf32> -> vector<8x8xf32>
    %c8_49 = arith.constant 8 : index
    %c24_50 = arith.constant 24 : index
    %149 = vector.load %arg15[%c8_49, %c24_50] : memref<16x32xf32, #tpu.memory_space<vmem>>, vector<8x8xf32>
    tpu.vector_store %arg15[%c8_49, %c24_50], %148 {strides = array<i32>} : memref<16x32xf32, #tpu.memory_space<vmem>>, vector<8x8xf32>,
    %c0_51 = arith.constant 0 : index
    %c0_52 = arith.constant 0 : index
    %150 = vector.load %arg15[%c0_51, %c0_52] : memref<16x32xf32, #tpu.memory_space<vmem>>, vector<16x32xf32>
    %151 = arith.truncf %150 : vector<16x32xf32> to vector<16x32xbf16>
    %c0_53 = arith.constant 0 : index
    %c0_54 = arith.constant 0 : index
    %152 = vector.load %arg4[%c0_53, %c0_54] : memref<32x32xbf16, #tpu.memory_space<vmem>>, vector<32x32xbf16>
    %cst_55 = arith.constant dense<0.000000e+00> : vector<16x32xf32>
    %153 = tpu.matmul %151, %152, %cst_55 {dimension_numbers = #tpu.dot_dimension_numbers<[1], [0], [0], [1], [0, 0, 1, 1], [], []>} : vector<16x32xbf16>, vector<32x32xbf16>, vector<16x32xf32> -> vector<16x32xf32>
    %c0_56 = arith.constant 0 : index
    %c0_57 = arith.constant 0 : index
    %154 = vector.load %arg5[%c0_56, %c0_57] : memref<1x32xf32, #tpu.memory_space<vmem>>, vector<1x32xf32>
    %155 = vector.broadcast %154 : vector<1x32xf32> to vector<16x32xf32>
    %156 = arith.addf %153, %155 : vector<16x32xf32>
    %157 = arith.addf %1, %156 : vector<16x32xf32>
    %cst_58 = arith.constant dense<0.000000e+00> : vector<16xf32>
    %158 = vector.multi_reduction <add>, %157, %cst_58 [1] : vector<16x32xf32> to vector<16xf32>
    %159 = vector.shape_cast %158 : vector<16xf32> to vector<16x1xf32>
    %cst_59 = arith.constant 3.200000e+01 : f32
    %160 = vector.broadcast %cst_59 : f32 to vector<16x1xf32>
    %161 = arith.divf %159, %160 : vector<16x1xf32>
    %162 = vector.broadcast %161 : vector<16x1xf32> to vector<16x32xf32>
    %163 = arith.subf %157, %162 : vector<16x32xf32>
    %164 = arith.mulf %163, %163 : vector<16x32xf32>
    %cst_60 = arith.constant dense<0.000000e+00> : vector<16xf32>
    %165 = vector.multi_reduction <add>, %164, %cst_60 [1] : vector<16x32xf32> to vector<16xf32>
    %166 = vector.shape_cast %165 : vector<16xf32> to vector<16x1xf32>
    %cst_61 = arith.constant 3.200000e+01 : f32
    %167 = vector.broadcast %cst_61 : f32 to vector<16x1xf32>
    %168 = arith.divf %166, %167 : vector<16x1xf32>
    %169 = vector.broadcast %161 : vector<16x1xf32> to vector<16x32xf32>
    %170 = arith.subf %157, %169 : vector<16x32xf32>
    %cst_62 = arith.constant 9.99999974E-6 : f32
    %171 = vector.broadcast %cst_62 : f32 to vector<16x1xf32>
    %172 = arith.addf %168, %171 : vector<16x1xf32>
    %173 = math.rsqrt %172 : vector<16x1xf32>
    %174 = vector.broadcast %173 : vector<16x1xf32> to vector<16x32xf32>
    %175 = arith.mulf %170, %174 : vector<16x32xf32>
    %c0_63 = arith.constant 0 : index
    %c0_64 = arith.constant 0 : index
    %176 = vector.load %arg6[%c0_63, %c0_64] : memref<1x32xf32, #tpu.memory_space<vmem>>, vector<1x32xf32>
    %177 = vector.broadcast %176 : vector<1x32xf32> to vector<16x32xf32>
    %178 = arith.mulf %175, %177 : vector<16x32xf32>
    %c0_65 = arith.constant 0 : index
    %c0_66 = arith.constant 0 : index
    %179 = vector.load %arg7[%c0_65, %c0_66] : memref<1x32xf32, #tpu.memory_space<vmem>>, vector<1x32xf32>
    %180 = vector.broadcast %179 : vector<1x32xf32> to vector<16x32xf32>
    %181 = arith.addf %178, %180 : vector<16x32xf32>
    %182 = arith.truncf %181 : vector<16x32xf32> to vector<16x32xbf16>
    %c0_67 = arith.constant 0 : index
    %c0_68 = arith.constant 0 : index
    %183 = vector.load %arg8[%c0_67, %c0_68] : memref<32x128xbf16, #tpu.memory_space<vmem>>, vector<32x128xbf16>
    %cst_69 = arith.constant dense<0.000000e+00> : vector<16x128xf32>
    %184 = tpu.matmul %182, %183, %cst_69 {dimension_numbers = #tpu.dot_dimension_numbers<[1], [0], [0], [1], [0, 0, 1, 1], [], []>} : vector<16x32xbf16>, vector<32x128xbf16>, vector<16x128xf32> -> vector<16x128xf32>
    %c0_70 = arith.constant 0 : index
    %c0_71 = arith.constant 0 : index
    %185 = vector.load %arg9[%c0_70, %c0_71] : memref<1x128xf32, #tpu.memory_space<vmem>>, vector<1x128xf32>
    %186 = vector.broadcast %185 : vector<1x128xf32> to vector<16x128xf32>
    %187 = arith.addf %184, %186 : vector<16x128xf32>
    %cst_72 = arith.constant 0.000000e+00 : f32
    %188 = vector.broadcast %cst_72 : f32 to vector<16x128xf32>
    %189 = arith.maximumf %187, %188 : vector<16x128xf32>
    %190 = arith.truncf %189 : vector<16x128xf32> to vector<16x128xbf16>
    %c0_73 = arith.constant 0 : index
    %c0_74 = arith.constant 0 : index
    %191 = vector.load %arg10[%c0_73, %c0_74] : memref<128x32xbf16, #tpu.memory_space<vmem>>, vector<128x32xbf16>
    %cst_75 = arith.constant dense<0.000000e+00> : vector<16x32xf32>
    %192 = tpu.matmul %190, %191, %cst_75 {dimension_numbers = #tpu.dot_dimension_numbers<[1], [0], [0], [1], [0, 0, 1, 1], [], []>} : vector<16x128xbf16>, vector<128x32xbf16>, vector<16x32xf32> -> vector<16x32xf32>
    %c0_76 = arith.constant 0 : index
    %c0_77 = arith.constant 0 : index
    %193 = vector.load %arg11[%c0_76, %c0_77] : memref<1x32xf32, #tpu.memory_space<vmem>>, vector<1x32xf32>
    %194 = vector.broadcast %193 : vector<1x32xf32> to vector<16x32xf32>
    %195 = arith.addf %192, %194 : vector<16x32xf32>
    %196 = arith.addf %181, %195 : vector<16x32xf32>
    %cst_78 = arith.constant dense<0.000000e+00> : vector<16xf32>
    %197 = vector.multi_reduction <add>, %196, %cst_78 [1] : vector<16x32xf32> to vector<16xf32>
    %198 = vector.shape_cast %197 : vector<16xf32> to vector<16x1xf32>
    %cst_79 = arith.constant 3.200000e+01 : f32
    %199 = vector.broadcast %cst_79 : f32 to vector<16x1xf32>
    %200 = arith.divf %198, %199 : vector<16x1xf32>
    %201 = vector.broadcast %200 : vector<16x1xf32> to vector<16x32xf32>
    %202 = arith.subf %196, %201 : vector<16x32xf32>
    %203 = arith.mulf %202, %202 : vector<16x32xf32>
    %cst_80 = arith.constant dense<0.000000e+00> : vector<16xf32>
    %204 = vector.multi_reduction <add>, %203, %cst_80 [1] : vector<16x32xf32> to vector<16xf32>
    %205 = vector.shape_cast %204 : vector<16xf32> to vector<16x1xf32>
    %cst_81 = arith.constant 3.200000e+01 : f32
    %206 = vector.broadcast %cst_81 : f32 to vector<16x1xf32>
    %207 = arith.divf %205, %206 : vector<16x1xf32>
    %208 = vector.broadcast %200 : vector<16x1xf32> to vector<16x32xf32>
    %209 = arith.subf %196, %208 : vector<16x32xf32>
    %cst_82 = arith.constant 9.99999974E-6 : f32
    %210 = vector.broadcast %cst_82 : f32 to vector<16x1xf32>
    %211 = arith.addf %207, %210 : vector<16x1xf32>
    %212 = math.rsqrt %211 : vector<16x1xf32>
    %213 = vector.broadcast %212 : vector<16x1xf32> to vector<16x32xf32>
    %214 = arith.mulf %209, %213 : vector<16x32xf32>
    %c0_83 = arith.constant 0 : index
    %c0_84 = arith.constant 0 : index
    %215 = vector.load %arg12[%c0_83, %c0_84] : memref<1x32xf32, #tpu.memory_space<vmem>>, vector<1x32xf32>
    %216 = vector.broadcast %215 : vector<1x32xf32> to vector<16x32xf32>
    %217 = arith.mulf %214, %216 : vector<16x32xf32>
    %c0_85 = arith.constant 0 : index
    %c0_86 = arith.constant 0 : index
    %218 = vector.load %arg13[%c0_85, %c0_86] : memref<1x32xf32, #tpu.memory_space<vmem>>, vector<1x32xf32>
    %219 = vector.broadcast %218 : vector<1x32xf32> to vector<16x32xf32>
    %220 = arith.addf %217, %219 : vector<16x32xf32>
    %221 = vector.shape_cast %220 : vector<16x32xf32> to vector<2x8x32xf32>
    %c0_87 = arith.constant 0 : index
    %c0_88 = arith.constant 0 : index
    %c0_89 = arith.constant 0 : index
    %222 = vector.load %arg14[%c0_87, %c0_88, %c0_89] : memref<2x8x32xf32, #tpu.memory_space<vmem>>, vector<2x8x32xf32>
    tpu.vector_store %arg14[%c0_87, %c0_88, %c0_89], %221 {strides = array<i32>} : memref<2x8x32xf32, #tpu.memory_space<vmem>>, vector<2x8x32xf32>,
    return
  }
  func.func @transform_0(%arg0: i32) -> (i32, i32, i32) {
    %c0_i32 = arith.constant 0 : i32
    %c0_i32_0 = arith.constant 0 : i32
    %c0_i32_1 = arith.constant 0 : i32
    return %arg0, %c0_i32, %c0_i32_0 : i32, i32, i32
  }
  func.func @transform_1(%arg0: i32) -> (i32, i32) {
    %c0_i32 = arith.constant 0 : i32
    %c0_i32_0 = arith.constant 0 : i32
    %c0_i32_1 = arith.constant 0 : i32
    return %c0_i32, %c0_i32_0 : i32, i32
  }
  func.func @transform_2(%arg0: i32) -> (i32, i32) {
    %c0_i32 = arith.constant 0 : i32
    %c0_i32_0 = arith.constant 0 : i32
    %c0_i32_1 = arith.constant 0 : i32
    return %c0_i32, %c0_i32_0 : i32, i32
  }
  func.func @transform_3(%arg0: i32) -> (i32, i32) {
    %c0_i32 = arith.constant 0 : i32
    %c0_i32_0 = arith.constant 0 : i32
    %c0_i32_1 = arith.constant 0 : i32
    return %c0_i32, %c0_i32_0 : i32, i32
  }
  func.func @transform_4(%arg0: i32) -> (i32, i32) {
    %c0_i32 = arith.constant 0 : i32
    %c0_i32_0 = arith.constant 0 : i32
    %c0_i32_1 = arith.constant 0 : i32
    return %c0_i32, %c0_i32_0 : i32, i32
  }
  func.func @transform_5(%arg0: i32) -> (i32, i32) {
    %c0_i32 = arith.constant 0 : i32
    %c0_i32_0 = arith.constant 0 : i32
    %c0_i32_1 = arith.constant 0 : i32
    return %c0_i32, %c0_i32_0 : i32, i32
  }
  func.func @transform_6(%arg0: i32) -> (i32, i32) {
    %c0_i32 = arith.constant 0 : i32
    %c0_i32_0 = arith.constant 0 : i32
    %c0_i32_1 = arith.constant 0 : i32
    return %c0_i32, %c0_i32_0 : i32, i32
  }
  func.func @transform_7(%arg0: i32) -> (i32, i32) {
    %c0_i32 = arith.constant 0 : i32
    %c0_i32_0 = arith.constant 0 : i32
    %c0_i32_1 = arith.constant 0 : i32
    return %c0_i32, %c0_i32_0 : i32, i32
  }
  func.func @transform_8(%arg0: i32) -> (i32, i32) {
    %c0_i32 = arith.constant 0 : i32
    %c0_i32_0 = arith.constant 0 : i32
    %c0_i32_1 = arith.constant 0 : i32
    return %c0_i32, %c0_i32_0 : i32, i32
  }
  func.func @transform_9(%arg0: i32) -> (i32, i32) {
    %c0_i32 = arith.constant 0 : i32
    %c0_i32_0 = arith.constant 0 : i32
    %c0_i32_1 = arith.constant 0 : i32
    return %c0_i32, %c0_i32_0 : i32, i32
  }
  func.func @transform_10(%arg0: i32) -> (i32, i32) {
    %c0_i32 = arith.constant 0 : i32
    %c0_i32_0 = arith.constant 0 : i32
    %c0_i32_1 = arith.constant 0 : i32
    return %c0_i32, %c0_i32_0 : i32, i32
  }
  func.func @transform_11(%arg0: i32) -> (i32, i32) {
    %c0_i32 = arith.constant 0 : i32
    %c0_i32_0 = arith.constant 0 : i32
    %c0_i32_1 = arith.constant 0 : i32
    return %c0_i32, %c0_i32_0 : i32, i32
  }
  func.func @transform_12(%arg0: i32) -> (i32, i32) {
    %c0_i32 = arith.constant 0 : i32
    %c0_i32_0 = arith.constant 0 : i32
    %c0_i32_1 = arith.constant 0 : i32
    return %c0_i32, %c0_i32_0 : i32, i32
  }
  func.func @transform_13(%arg0: i32) -> (i32, i32, i32) {
    %c0_i32 = arith.constant 0 : i32
    %c0_i32_0 = arith.constant 0 : i32
    %c0_i32_1 = arith.constant 0 : i32
    return %arg0, %c0_i32, %c0_i32_0 : i32, i32, i32
  }
}

</mosaic_0001>

<llo_original>
// kernel: tpu_custom_call.1
$region0: #{tpu_custom_call.1}
  #allocation0 [shape = 'u32[]', space=smem, size = 0x4, offset = 0x4, fixed_abs, tag = 'smem constant byte address 0x4 - core index']
  #allocation1 [shape = 'u32[144,128]{1,0:T(1,128)}', space=vmem, size = 0x12000, scoped, tag = 'internal scratch']
  #allocation2 [shape = 'f32[16,32]{1,0:T(8,128)}', space=vmem, size = 0x2000, scoped, tag = 'scratch operand']
  %s0 = inlined_call_operand.vmem [shape: f32[4,8,32], index: 0, kind: input, shape index: {}]
  %s1 = inlined_call_operand.vmem [shape: bf16[32,96], index: 1, kind: input, shape index: {}]
  %s2 = inlined_call_operand.hbm [shape: f32[1,96], index: 2, kind: input, shape index: {}]
  %s3 = inlined_call_operand.vmem [shape: bf16[32,32], index: 3, kind: input, shape index: {}]
  %s4 = inlined_call_operand.hbm [shape: f32[1,32], index: 4, kind: input, shape index: {}]
  %s5 = inlined_call_operand.hbm [shape: f32[1,32], index: 5, kind: input, shape index: {}]
  %s6 = inlined_call_operand.hbm [shape: f32[1,32], index: 6, kind: input, shape index: {}]
  %s7 = inlined_call_operand.vmem [shape: bf16[32,128], index: 7, kind: input, shape index: {}]
  %s8 = inlined_call_operand.hbm [shape: f32[1,128], index: 8, kind: input, shape index: {}]
  %s9 = inlined_call_operand.vmem [shape: bf16[128,32], index: 9, kind: input, shape index: {}]
  %s10 = inlined_call_operand.vmem [shape: f32[1,32], index: 10, kind: input, shape index: {}]
  %s11 = inlined_call_operand.vmem [shape: f32[1,32], index: 11, kind: input, shape index: {}]
  %s12 = inlined_call_operand.vmem [shape: f32[1,32], index: 12, kind: input, shape index: {}]
  %s13 = inlined_call_operand.hbm [shape: f32[4,8,32], index: 13, kind: output, shape index: {}]
  %s14 = sld [smem:[#allocation0]]
  $region105: #{tpu_custom_call.1} parent=0
    _
  %s16 = ssub.s32 1, %s14
  %s17 = scalar_select 0, %s16, %s14
  $region1: #{tpu_custom_call.1} parent=0
    #allocation3 [shape = 'u8[512]{0}', space=vmem, size = 0x400, scoped, tag = 'input window, operand 2, single buffered']
    #allocation4 [shape = 's32[2]{0}', space=sflag, size = 0x8, scoped, tag = 'scoped memory for tpu_custom_call.1']
    #allocation5 [shape = 's32[2]{0}', space=sflag, size = 0x8, scoped, tag = 'scoped memory for tpu_custom_call.1']
    #allocation6 [shape = 'u8[512]{0}', space=vmem, size = 0x400, scoped, tag = 'input window, operand 4, single buffered']
    #allocation7 [shape = 's32[1]{0}', space=sflag, size = 0x4, scoped, tag = 'scoped memory for tpu_custom_call.1']
    #allocation8 [shape = 'u8[512]{0}', space=vmem, size = 0x400, scoped, tag = 'input window, operand 5, single buffered']
    #allocation9 [shape = 'u8[512]{0}', space=vmem, size = 0x400, scoped, tag = 'input window, operand 6, single buffered']
    #allocation10 [shape = 's32[1]{0}', space=sflag, size = 0x4, scoped, tag = 'scoped memory for tpu_custom_call.1']
    #allocation11 [shape = 'u8[512]{0}', space=vmem, size = 0x400, scoped, tag = 'input window, operand 8, single buffered']
    #allocation12 [shape = 'u8[16384]{0}', space=vmem, size = 0x4000, scoped, tag = 'output window, operand 0']
    %18 = vsyncpa [#allocation4], 0
    %19 = vsyncpa [#allocation7], 0
    %20 = vsyncpa [#allocation10], 0
    %21 = vsyncpa [#allocation5], 0
    %s22 = scalar_lea.sflag [#allocation5], 1
    %23 = vsyncpa %s22, 0
    loop: start=0, step=1, limit=4
    $region2: #{tpu_custom_call.1} parent=1 // loop_pre_header
      _
    $region3: #{tpu_custom_call.1} parent=1 // loop_header
      %s25 = sphi 0, %s29
      %p26 = scmp.ge.s32.totalorder %s25, 4
      %s35 = sphi 0, %s37
      %s38 = sphi 0, %s35
      %s39 = sphi 0, %s38
      %s55 = sphi 0, %s39
      %s59 = sphi 0, %s59
      %s61 = sphi 0, %s59
      %s62 = sphi 0, %s61
      %s76 = sphi 0, %s62
      %s80 = sphi 0, %s80
      %s82 = sphi 0, %s80
      %s83 = sphi 0, %s82
      %s97 = sphi 0, %s83
      %s101 = sphi 0, %s101
      %s103 = sphi 0, %s101
      %s104 = sphi 0, %s103
      %s118 = sphi 0, %s104
      %s122 = sphi 0, %s122
      %s124 = sphi 0, %s122
      %s125 = sphi 0, %s124
      %s139 = sphi 0, %s125
      %s143 = sphi 0, %s143
      %s145 = sphi 0, %s143
      %s146 = sphi 0, %s145
      %s160 = sphi 0, %s146
      %s164 = sphi 0, %s164
      %s166 = sphi 0, %s164
      %s167 = sphi 0, %s166
      %s181 = sphi 0, %s167
      %s185 = sphi 0, %s185
      %s187 = sphi 0, %s185
      %s188 = sphi 0, %s187
      %s202 = sphi 0, %s188
      %s206 = sphi 0, %s206
      %s208 = sphi 0, %s206
      %s209 = sphi 0, %s208
      %s223 = sphi 0, %s209
      %s227 = sphi 0, %s227
      %s229 = sphi 0, %s227
      %s230 = sphi 0, %s229
      %s244 = sphi 0, %s230
      %s248 = sphi 0, %s248
      %s250 = sphi 0, %s248
      %s251 = sphi 0, %s250
      %s265 = sphi 0, %s251
      %s269 = sphi 0, %s269
      %s271 = sphi 0, %s269
      %s272 = sphi 0, %s271
      %s286 = sphi 0, %s272
      %s290 = sphi 0, %s290
      %s292 = sphi 0, %s290
      %s293 = sphi 0, %s292
      %s307 = sphi 0, %s293
      %s313 = sphi 0, %s315
      %s316 = sphi 0, %s313
      %s317 = sphi 0, %s316
      %s333 = sphi 0, %s317
    $region4: #{tpu_custom_call.1} parent=1 // loop_header_branch
      %28 = sbr.rel (%p26) target = $region8
    $region5: #{tpu_custom_call.1} parent=1 // loop_body
      %s30 = ssub.s32 %s25, 1
      %s31 = ssub.s32 %s25, 2
      %s32 = sadd.s32 %s25, 1
      %s33 = ssub.s32 %s25, %s32
      %p34 = scmp.eq.s32.totalorder %s33, 0
      %s36 = sadd.s32 %s35, 1
      %s37 = scalar_select %p34, %s35, %s36
      %p40 = pneg %p34
      %p41 = scmp.eq.s32.totalorder %s25, 1
      %p42 = por %p40, %p41
      %p43 = scmp.ne.s32.totalorder %s35, %s38
      %p44 = scmp.eq.s32.totalorder %s25, 0
      %p45 = por %p43, %p44
      %p46 = scmp.ne.s32.totalorder %s35, %s38
      %p47 = scmp.eq.s32.totalorder %s30, 1
      %p48 = por %p46, %p47
      %p49 = scmp.ne.s32.totalorder %s38, %s39
      %p50 = scmp.eq.s32.totalorder %s30, 0
      %p51 = por %p49, %p50
      %p52 = scmp.ne.s32.totalorder %s38, %s39
      %p53 = scmp.eq.s32.totalorder %s31, 1
      %p54 = por %p52, %p53
      %p56 = scmp.ne.s32.totalorder %s39, %s55
      %p57 = scmp.eq.s32.totalorder %s31, 0
      %p58 = por %p56, %p57
      %s60 = sadd.s32 %s59, 1
      %p63 = scmp.eq.s32.totalorder %s25, 1
      %p64 = scmp.ne.s32.totalorder %s59, %s61
      %p65 = scmp.eq.s32.totalorder %s25, 0
      %p66 = por %p64, %p65
      %p67 = scmp.ne.s32.totalorder %s59, %s61
      %p68 = scmp.eq.s32.totalorder %s30, 1
      %p69 = por %p67, %p68
      %p70 = scmp.ne.s32.totalorder %s61, %s62
      %p71 = scmp.eq.s32.totalorder %s30, 0
      %p72 = por %p70, %p71
      %p73 = scmp.ne.s32.totalorder %s61, %s62
      %p74 = scmp.eq.s32.totalorder %s31, 1
      %p75 = por %p73, %p74
      %p77 = scmp.ne.s32.totalorder %s62, %s76
      %p78 = scmp.eq.s32.totalorder %s31, 0
      %p79 = por %p77, %p78
      %s81 = sadd.s32 %s80, 1
      %p84 = scmp.eq.s32.totalorder %s25, 1
      %p85 = scmp.ne.s32.totalorder %s80, %s82
      %p86 = scmp.eq.s32.totalorder %s25, 0
      %p87 = por %p85, %p86
      %p88 = scmp.ne.s32.totalorder %s80, %s82
      %p89 = scmp.eq.s32.totalorder %s30, 1
      %p90 = por %p88, %p89
      %p91 = scmp.ne.s32.totalorder %s82, %s83
      %p92 = scmp.eq.s32.totalorder %s30, 0
      %p93 = por %p91, %p92
      %p94 = scmp.ne.s32.totalorder %s82, %s83
      %p95 = scmp.eq.s32.totalorder %s31, 1
      %p96 = por %p94, %p95
      %p98 = scmp.ne.s32.totalorder %s83, %s97
      %p99 = scmp.eq.s32.totalorder %s31, 0
      %p100 = por %p98, %p99
      %s102 = sadd.s32 %s101, 1
      %p105 = scmp.eq.s32.totalorder %s25, 1
      %p106 = scmp.ne.s32.totalorder %s101, %s103
      %p107 = scmp.eq.s32.totalorder %s25, 0
      %p108 = por %p106, %p107
      %p109 = scmp.ne.s32.totalorder %s101, %s103
      %p110 = scmp.eq.s32.totalorder %s30, 1
      %p111 = por %p109, %p110
      %p112 = scmp.ne.s32.totalorder %s103, %s104
      %p113 = scmp.eq.s32.totalorder %s30, 0
      %p114 = por %p112, %p113
      %p115 = scmp.ne.s32.totalorder %s103, %s104
      %p116 = scmp.eq.s32.totalorder %s31, 1
      %p117 = por %p115, %p116
      %p119 = scmp.ne.s32.totalorder %s104, %s118
      %p120 = scmp.eq.s32.totalorder %s31, 0
      %p121 = por %p119, %p120
      %s123 = sadd.s32 %s122, 1
      %p126 = scmp.eq.s32.totalorder %s25, 1
      %p127 = scmp.ne.s32.totalorder %s122, %s124
      %p128 = scmp.eq.s32.totalorder %s25, 0
      %p129 = por %p127, %p128
      %p130 = scmp.ne.s32.totalorder %s122, %s124
      %p131 = scmp.eq.s32.totalorder %s30, 1
      %p132 = por %p130, %p131
      %p133 = scmp.ne.s32.totalorder %s124, %s125
      %p134 = scmp.eq.s32.totalorder %s30, 0
      %p135 = por %p133, %p134
      %p136 = scmp.ne.s32.totalorder %s124, %s125
      %p137 = scmp.eq.s32.totalorder %s31, 1
      %p138 = por %p136, %p137
      %p140 = scmp.ne.s32.totalorder %s125, %s139
      %p141 = scmp.eq.s32.totalorder %s31, 0
      %p142 = por %p140, %p141
      %s144 = sadd.s32 %s143, 1
      %p147 = scmp.eq.s32.totalorder %s25, 1
      %p148 = scmp.ne.s32.totalorder %s143, %s145
      %p149 = scmp.eq.s32.totalorder %s25, 0
      %p150 = por %p148, %p149
      %p151 = scmp.ne.s32.totalorder %s143, %s145
      %p152 = scmp.eq.s32.totalorder %s30, 1
      %p153 = por %p151, %p152
      %p154 = scmp.ne.s32.totalorder %s145, %s146
      %p155 = scmp.eq.s32.totalorder %s30, 0
      %p156 = por %p154, %p155
      %p157 = scmp.ne.s32.totalorder %s145, %s146
      %p158 = scmp.eq.s32.totalorder %s31, 1
      %p159 = por %p157, %p158
      %p161 = scmp.ne.s32.totalorder %s146, %s160
      %p162 = scmp.eq.s32.totalorder %s31, 0
      %p163 = por %p161, %p162
      %s165 = sadd.s32 %s164, 1
      %p168 = scmp.eq.s32.totalorder %s25, 1
      %p169 = scmp.ne.s32.totalorder %s164, %s166
      %p170 = scmp.eq.s32.totalorder %s25, 0
      %p171 = por %p169, %p170
      %p172 = scmp.ne.s32.totalorder %s164, %s166
      %p173 = scmp.eq.s32.totalorder %s30, 1
      %p174 = por %p172, %p173
      %p175 = scmp.ne.s32.totalorder %s166, %s167
      %p176 = scmp.eq.s32.totalorder %s30, 0
      %p177 = por %p175, %p176
      %p178 = scmp.ne.s32.totalorder %s166, %s167
      %p179 = scmp.eq.s32.totalorder %s31, 1
      %p180 = por %p178, %p179
      %p182 = scmp.ne.s32.totalorder %s167, %s181
      %p183 = scmp.eq.s32.totalorder %s31, 0
      %p184 = por %p182, %p183
      %s186 = sadd.s32 %s185, 1
      %p189 = scmp.eq.s32.totalorder %s25, 1
      %p190 = scmp.ne.s32.totalorder %s185, %s187
      %p191 = scmp.eq.s32.totalorder %s25, 0
      %p192 = por %p190, %p191
      %p193 = scmp.ne.s32.totalorder %s185, %s187
      %p194 = scmp.eq.s32.totalorder %s30, 1
      %p195 = por %p193, %p194
      %p196 = scmp.ne.s32.totalorder %s187, %s188
      %p197 = scmp.eq.s32.totalorder %s30, 0
      %p198 = por %p196, %p197
      %p199 = scmp.ne.s32.totalorder %s187, %s188
      %p200 = scmp.eq.s32.totalorder %s31, 1
      %p201 = por %p199, %p200
      %p203 = scmp.ne.s32.totalorder %s188, %s202
      %p204 = scmp.eq.s32.totalorder %s31, 0
      %p205 = por %p203, %p204
      %s207 = sadd.s32 %s206, 1
      %p210 = scmp.eq.s32.totalorder %s25, 1
      %p211 = scmp.ne.s32.totalorder %s206, %s208
      %p212 = scmp.eq.s32.totalorder %s25, 0
      %p213 = por %p211, %p212
      %p214 = scmp.ne.s32.totalorder %s206, %s208
      %p215 = scmp.eq.s32.totalorder %s30, 1
      %p216 = por %p214, %p215
      %p217 = scmp.ne.s32.totalorder %s208, %s209
      %p218 = scmp.eq.s32.totalorder %s30, 0
      %p219 = por %p217, %p218
      %p220 = scmp.ne.s32.totalorder %s208, %s209
      %p221 = scmp.eq.s32.totalorder %s31, 1
      %p222 = por %p220, %p221
      %p224 = scmp.ne.s32.totalorder %s209, %s223
      %p225 = scmp.eq.s32.totalorder %s31, 0
      %p226 = por %p224, %p225
      %s228 = sadd.s32 %s227, 1
      %p231 = scmp.eq.s32.totalorder %s25, 1
      %p232 = scmp.ne.s32.totalorder %s227, %s229
      %p233 = scmp.eq.s32.totalorder %s25, 0
      %p234 = por %p232, %p233
      %p235 = scmp.ne.s32.totalorder %s227, %s229
      %p236 = scmp.eq.s32.totalorder %s30, 1
      %p237 = por %p235, %p236
      %p238 = scmp.ne.s32.totalorder %s229, %s230
      %p239 = scmp.eq.s32.totalorder %s30, 0
      %p240 = por %p238, %p239
      %p241 = scmp.ne.s32.totalorder %s229, %s230
      %p242 = scmp.eq.s32.totalorder %s31, 1
      %p243 = por %p241, %p242
      %p245 = scmp.ne.s32.totalorder %s230, %s244
      %p246 = scmp.eq.s32.totalorder %s31, 0
      %p247 = por %p245, %p246
      %s249 = sadd.s32 %s248, 1
      %p252 = scmp.eq.s32.totalorder %s25, 1
      %p253 = scmp.ne.s32.totalorder %s248, %s250
      %p254 = scmp.eq.s32.totalorder %s25, 0
      %p255 = por %p253, %p254
      %p256 = scmp.ne.s32.totalorder %s248, %s250
      %p257 = scmp.eq.s32.totalorder %s30, 1
      %p258 = por %p256, %p257
      %p259 = scmp.ne.s32.totalorder %s250, %s251
      %p260 = scmp.eq.s32.totalorder %s30, 0
      %p261 = por %p259, %p260
      %p262 = scmp.ne.s32.totalorder %s250, %s251
      %p263 = scmp.eq.s32.totalorder %s31, 1
      %p264 = por %p262, %p263
      %p266 = scmp.ne.s32.totalorder %s251, %s265
      %p267 = scmp.eq.s32.totalorder %s31, 0
      %p268 = por %p266, %p267
      %s270 = sadd.s32 %s269, 1
      %p273 = scmp.eq.s32.totalorder %s25, 1
      %p274 = scmp.ne.s32.totalorder %s269, %s271
      %p275 = scmp.eq.s32.totalorder %s25, 0
      %p276 = por %p274, %p275
      %p277 = scmp.ne.s32.totalorder %s269, %s271
      %p278 = scmp.eq.s32.totalorder %s30, 1
      %p279 = por %p277, %p278
      %p280 = scmp.ne.s32.totalorder %s271, %s272
      %p281 = scmp.eq.s32.totalorder %s30, 0
      %p282 = por %p280, %p281
      %p283 = scmp.ne.s32.totalorder %s271, %s272
      %p284 = scmp.eq.s32.totalorder %s31, 1
      %p285 = por %p283, %p284
      %p287 = scmp.ne.s32.totalorder %s272, %s286
      %p288 = scmp.eq.s32.totalorder %s31, 0
      %p289 = por %p287, %p288
      %s291 = sadd.s32 %s290, 1
      %p294 = scmp.eq.s32.totalorder %s25, 1
      %p295 = scmp.ne.s32.totalorder %s290, %s292
      %p296 = scmp.eq.s32.totalorder %s25, 0
      %p297 = por %p295, %p296
      %p298 = scmp.ne.s32.totalorder %s290, %s292
      %p299 = scmp.eq.s32.totalorder %s30, 1
      %p300 = por %p298, %p299
      %p301 = scmp.ne.s32.totalorder %s292, %s293
      %p302 = scmp.eq.s32.totalorder %s30, 0
      %p303 = por %p301, %p302
      %p304 = scmp.ne.s32.totalorder %s292, %s293
      %p305 = scmp.eq.s32.totalorder %s31, 1
      %p306 = por %p304, %p305
      %p308 = scmp.ne.s32.totalorder %s293, %s307
      %p309 = scmp.eq.s32.totalorder %s31, 0
      %p310 = por %p308, %p309
      %s311 = ssub.s32 %s25, %s32
      %p312 = scmp.eq.s32.totalorder %s311, 0
      %s314 = sadd.s32 %s313, 1
      %s315 = scalar_select %p312, %s313, %s314
      %p318 = pneg %p312
      %p319 = scmp.eq.s32.totalorder %s25, 1
      %p320 = por %p318, %p319
      %p321 = scmp.ne.s32.totalorder %s313, %s316
      %p322 = scmp.eq.s32.totalorder %s25, 0
      %p323 = por %p321, %p322
      %p324 = scmp.ne.s32.totalorder %s313, %s316
      %p325 = scmp.eq.s32.totalorder %s30, 1
      %p326 = por %p324, %p325
      %p327 = scmp.ne.s32.totalorder %s316, %s317
      %p328 = scmp.eq.s32.totalorder %s30, 0
      %p329 = por %p327, %p328
      %p330 = scmp.ne.s32.totalorder %s316, %s317
      %p331 = scmp.eq.s32.totalorder %s31, 1
      %p332 = por %p330, %p331
      %p334 = scmp.ne.s32.totalorder %s317, %s333
      %p335 = scmp.eq.s32.totalorder %s31, 0
      %p336 = por %p334, %p335
      %p337 = scmp.le.s32.totalorder 1, %s25
      %p338 = scmp.lt.s32.totalorder %s25, 3
      %p339 = pnand %p337, %p338
      %p340 = pneg %p339
      // Predicated region
      $region9: #{tpu_custom_call.1} parent=5 // pred_check
        _
      $region10: #{tpu_custom_call.1} parent=5 // pred_check_branch
        %342 = sbr.rel (%p339) target = $region12
      $region11: #{tpu_custom_call.1} parent=5 // pred_region
        %s343 = ssub.s32 %s25, 1
        // Predicated region
        $region13: #{tpu_custom_call.1} parent=11 // pred_check
          %p344 = pneg %p72
        $region14: #{tpu_custom_call.1} parent=11 // pred_check_branch
          %346 = sbr.rel (%p344) target = $region16
        $region15: #{tpu_custom_call.1} parent=11 // pred_region
          _
        $region16: #{tpu_custom_call.1} parent=11 // pred_fallthru
          _
        // Predicated region
        $region17: #{tpu_custom_call.1} parent=11 // pred_check
          %p347 = pneg %p93
        $region18: #{tpu_custom_call.1} parent=11 // pred_check_branch
          %349 = sbr.rel (%p347) target = $region20
        $region19: #{tpu_custom_call.1} parent=11 // pred_region
          %s351 = ssub.s32 16, 16
          %352 = vsyncadd [#allocation4], %s351
          %s354 = sshll.u32 [#allocation3], 4
          %s355 = int_to_ptr.vmem [resolvable:$true] %s354
          %357 = dma.hbm_to_vmem [thread:$0]  %s2, 16, %s355, [#allocation4]
        $region20: #{tpu_custom_call.1} parent=11 // pred_fallthru
          _
        // Predicated region
        $region21: #{tpu_custom_call.1} parent=11 // pred_check
          %p358 = pneg %p114
        $region22: #{tpu_custom_call.1} parent=11 // pred_check_branch
          %360 = sbr.rel (%p358) target = $region24
        $region23: #{tpu_custom_call.1} parent=11 // pred_region
          _
        $region24: #{tpu_custom_call.1} parent=11 // pred_fallthru
          _
        // Predicated region
        $region25: #{tpu_custom_call.1} parent=11 // pred_check
          %p361 = pneg %p135
        $region26: #{tpu_custom_call.1} parent=11 // pred_check_branch
          %363 = sbr.rel (%p361) target = $region28
        $region27: #{tpu_custom_call.1} parent=11 // pred_region
          %s365 = ssub.s32 16, 16
          %366 = vsyncadd [#allocation7], %s365
          %s368 = sshll.u32 [#allocation6], 4
          %s369 = int_to_ptr.vmem [resolvable:$true] %s368
          %371 = dma.hbm_to_vmem [thread:$0]  %s4, 16, %s369, [#allocation7]
        $region28: #{tpu_custom_call.1} parent=11 // pred_fallthru
          _
        // Predicated region
        $region29: #{tpu_custom_call.1} parent=11 // pred_check
          %p372 = pneg %p156
        $region30: #{tpu_custom_call.1} parent=11 // pred_check_branch
          %374 = sbr.rel (%p372) target = $region32
        $region31: #{tpu_custom_call.1} parent=11 // pred_region
          %s376 = ssub.s32 16, 16
          %377 = vsyncadd [#allocation7], %s376
          %s379 = sshll.u32 [#allocation8], 4
          %s380 = int_to_ptr.vmem [resolvable:$true] %s379
          %382 = dma.hbm_to_vmem [thread:$0]  %s5, 16, %s380, [#allocation7]
        $region32: #{tpu_custom_call.1} parent=11 // pred_fallthru
          _
        // Predicated region
        $region33: #{tpu_custom_call.1} parent=11 // pred_check
          %p383 = pneg %p177
        $region34: #{tpu_custom_call.1} parent=11 // pred_check_branch
          %385 = sbr.rel (%p383) target = $region36
        $region35: #{tpu_custom_call.1} parent=11 // pred_region
          %s387 = ssub.s32 16, 16
          %388 = vsyncadd [#allocation10], %s387
          %s390 = sshll.u32 [#allocation9], 4
          %s391 = int_to_ptr.vmem [resolvable:$true] %s390
          %393 = dma.hbm_to_vmem [thread:$0]  %s6, 16, %s391, [#allocation10]
        $region36: #{tpu_custom_call.1} parent=11 // pred_fallthru
          _
        // Predicated region
        $region37: #{tpu_custom_call.1} parent=11 // pred_check
          %p394 = pneg %p198
        $region38: #{tpu_custom_call.1} parent=11 // pred_check_branch
          %396 = sbr.rel (%p394) target = $region40
        $region39: #{tpu_custom_call.1} parent=11 // pred_region
          _
        $region40: #{tpu_custom_call.1} parent=11 // pred_fallthru
          _
        // Predicated region
        $region41: #{tpu_custom_call.1} parent=11 // pred_check
          %p397 = pneg %p219
        $region42: #{tpu_custom_call.1} parent=11 // pred_check_branch
          %399 = sbr.rel (%p397) target = $region44
        $region43: #{tpu_custom_call.1} parent=11 // pred_region
          %s401 = ssub.s32 16, 16
          %402 = vsyncadd [#allocation10], %s401
          %s404 = sshll.u32 [#allocation11], 4
          %s405 = int_to_ptr.vmem [resolvable:$true] %s404
          %407 = dma.hbm_to_vmem [thread:$0]  %s8, 16, %s405, [#allocation10]
        $region44: #{tpu_custom_call.1} parent=11 // pred_fallthru
          _
        // Predicated region
        $region45: #{tpu_custom_call.1} parent=11 // pred_check
          %p408 = pneg %p240
        $region46: #{tpu_custom_call.1} parent=11 // pred_check_branch
          %410 = sbr.rel (%p408) target = $region48
        $region47: #{tpu_custom_call.1} parent=11 // pred_region
          _
        $region48: #{tpu_custom_call.1} parent=11 // pred_fallthru
          _
        // Predicated region
        $region49: #{tpu_custom_call.1} parent=11 // pred_check
          %p411 = pneg %p261
        $region50: #{tpu_custom_call.1} parent=11 // pred_check_branch
          %413 = sbr.rel (%p411) target = $region52
        $region51: #{tpu_custom_call.1} parent=11 // pred_region
          _
        $region52: #{tpu_custom_call.1} parent=11 // pred_fallthru
          _
        // Predicated region
        $region53: #{tpu_custom_call.1} parent=11 // pred_check
          %p414 = pneg %p282
        $region54: #{tpu_custom_call.1} parent=11 // pred_check_branch
          %416 = sbr.rel (%p414) target = $region56
        $region55: #{tpu_custom_call.1} parent=11 // pred_region
          _
        $region56: #{tpu_custom_call.1} parent=11 // pred_fallthru
          _
        // Predicated region
        $region57: #{tpu_custom_call.1} parent=11 // pred_check
          %p417 = pneg %p303
        $region58: #{tpu_custom_call.1} parent=11 // pred_check_branch
          %419 = sbr.rel (%p417) target = $region60
        $region59: #{tpu_custom_call.1} parent=11 // pred_region
          _
        $region60: #{tpu_custom_call.1} parent=11 // pred_fallthru
          _
      $region12: #{tpu_custom_call.1} parent=5 // pred_fallthru
        _
      %p420 = scmp.lt.s32.totalorder %s25, 2
      // Predicated region
      $region61: #{tpu_custom_call.1} parent=5 // pred_check
        %p421 = pneg %p420
      $region62: #{tpu_custom_call.1} parent=5 // pred_check_branch
        %423 = sbr.rel (%p421) target = $region64
      $region63: #{tpu_custom_call.1} parent=5 // pred_region
        // Predicated region
        $region65: #{tpu_custom_call.1} parent=63 // pred_check
          %p424 = pneg %p45
        $region66: #{tpu_custom_call.1} parent=63 // pred_check_branch
          %426 = sbr.rel (%p424) target = $region68
        $region67: #{tpu_custom_call.1} parent=63 // pred_region
          %s427 = smul.u32 2, %s25
          %p428 = scmp.lt.s32.totalorder %s427, 3
          %s429 = scalar_select %p428, %s427, 3
          %s430 = smul.addr %s429, 8
          %s431 = scalar_lea.vmem %s0, %s430
          %s432 = smul.u32 2, %s25
        $region68: #{tpu_custom_call.1} parent=63 // pred_fallthru
          _
      $region64: #{tpu_custom_call.1} parent=5 // pred_fallthru
        _
      %p433 = scmp.le.s32.totalorder 1, %s25
      %p434 = scmp.lt.s32.totalorder %s25, 3
      %p435 = pnand %p433, %p434
      %p436 = pneg %p435
      // Predicated region
      $region69: #{tpu_custom_call.1} parent=5 // pred_check
        _
      $region70: #{tpu_custom_call.1} parent=5 // pred_check_branch
        %438 = sbr.rel (%p435) target = $region72
      $region71: #{tpu_custom_call.1} parent=5 // pred_region
        %s439 = ssub.s32 %s25, 1
        // Predicated region
        $region73: #{tpu_custom_call.1} parent=71 // pred_check
          %p440 = pneg %p93
        $region74: #{tpu_custom_call.1} parent=71 // pred_check_branch
          %442 = sbr.rel (%p440) target = $region76
        $region75: #{tpu_custom_call.1} parent=71 // pred_region
          %443 = dma.done [#allocation4], 16
        $region76: #{tpu_custom_call.1} parent=71 // pred_fallthru
          _
        // Predicated region
        $region77: #{tpu_custom_call.1} parent=71 // pred_check
          %p444 = pneg %p135
        $region78: #{tpu_custom_call.1} parent=71 // pred_check_branch
          %446 = sbr.rel (%p444) target = $region80
        $region79: #{tpu_custom_call.1} parent=71 // pred_region
          %447 = dma.done [#allocation7], 16
        $region80: #{tpu_custom_call.1} parent=71 // pred_fallthru
          _
        // Predicated region
        $region81: #{tpu_custom_call.1} parent=71 // pred_check
          %p448 = pneg %p156
        $region82: #{tpu_custom_call.1} parent=71 // pred_check_branch
          %450 = sbr.rel (%p448) target = $region84
        $region83: #{tpu_custom_call.1} parent=71 // pred_region
          %451 = dma.done [#allocation7], 16
        $region84: #{tpu_custom_call.1} parent=71 // pred_fallthru
          _
        // Predicated region
        $region85: #{tpu_custom_call.1} parent=71 // pred_check
          %p452 = pneg %p177
        $region86: #{tpu_custom_call.1} parent=71 // pred_check_branch
          %454 = sbr.rel (%p452) target = $region88
        $region87: #{tpu_custom_call.1} parent=71 // pred_region
          %455 = dma.done [#allocation10], 16
        $region88: #{tpu_custom_call.1} parent=71 // pred_fallthru
          _
        // Predicated region
        $region89: #{tpu_custom_call.1} parent=71 // pred_check
          %p456 = pneg %p219
        $region90: #{tpu_custom_call.1} parent=71 // pred_check_branch
          %458 = sbr.rel (%p456) target = $region92
        $region91: #{tpu_custom_call.1} parent=71 // pred_region
          %459 = dma.done [#allocation10], 16
        $region92: #{tpu_custom_call.1} parent=71 // pred_fallthru
          _
        %s460 = smul.u32 2, %s30
        %p461 = scmp.lt.s32.totalorder %s460, 3
        %s462 = scalar_select %p461, %s460, 3
        %s463 = smul.addr %s462, 8
        %s464 = scalar_lea.vmem %s0, %s463
        %p465 = pneg %p51
        %p466 = pneg %p48
        %p467 = pneg %p72
        %p468 = pneg %p69
        %p469 = pneg %p93
        %p470 = pneg %p90
        %p471 = pneg %p114
        %p472 = pneg %p111
        %p473 = pneg %p135
        %p474 = pneg %p132
        %p475 = pneg %p156
        %p476 = pneg %p153
        %p477 = pneg %p177
        %p478 = pneg %p174
        %p479 = pneg %p198
        %p480 = pneg %p195
        %p481 = pneg %p219
        %p482 = pneg %p216
        %p483 = pneg %p240
        %p484 = pneg %p237
        %p485 = pneg %p261
        %p486 = pneg %p258
        %p487 = pneg %p282
        %p488 = pneg %p279
        %p489 = pneg %p303
        %p490 = pneg %p300
        %p491 = pneg %p329
        %p492 = pneg %p326
        %s493 = sand.u32 %s316, 1
        %s494 = scalar_lea.sflag [#allocation5], %s493
        %s495 = sand.u32 %s316, 1
        %s496 = smul.addr %s495, 16
        %s497 = scalar_lea.vmem [#allocation12], %s496
        %s498 = smul.u32 2, %s30
        %p499 = scmp.lt.s32.totalorder %s498, 3
        %s500 = scalar_select %p499, %s498, 3
        %s501 = smul.addr %s500, 8
        %s502 = scalar_lea.vmem %s0, %s501
        %s503 = smul.u32 2, %s30
        %s504 = smul.u32 2, %s30
        %v506 = vld [vmem:[%s502] sm:$0xff]
        %v507 = vld [vmem:[%s502 + $0x8] sm:$0xff]
        %v508 = vpack.c.bf16 %v507, %v506
        %v509 = vld [vmem:[%s1] sm:$0xf]
        %v510 = vld [vmem:[%s1 + $0x4] sm:$0xf]
        %v511 = vld [vmem:[%s1 + $0x8] sm:$0xf]
        %v512 = vld [vmem:[%s1 + $0xc] sm:$0xf]
        %v513 = vld [vmem:[#allocation3] sm:$0x1]
        %v515 = vlaneseq
        %v516 = vshrl.u32 %v515, 7
        %v517 = vsub.s32 0, %v516
        %v518 = vrot.slane %v513, %v517
        %v524 = vunpack.c.l.b16 %v509
        %v525 = vunpack.c.l.b16 %v510
        %v526 = vunpack.c.l.b16 %v511
        %v527 = vunpack.c.l.b16 %v512
        %v528 = vpack.c.b16 %v525, %v524
        %v529 = vpack.c.b16 %v527, %v526
        %vm532 = vcmask 261120
        %v534 = vsel %vm532, %v508, 0
        %536 = vmatprep.subr.bf16.mxu0 0
        %537 = vmatpush1.bf16.msra.mxu0 0
        %538 = vmatprep.subr.bf16.mxu0 0
        %539 = vmatpush1.bf16.msra.mxu0 0
        %540 = vmatprep.subr.bf16.mxu0 0
        %541 = vmatpush1.bf16.msra.mxu0 0
        %542 = vmatprep.subr.bf16.mxu0 0
        %543 = vmatpush1.bf16.msra.mxu0 0
        %544 = vmatprep.subr.bf16.mxu0 0
        %545 = vmatpush1.bf16.msra.mxu0 0
        %546 = vmatprep.subr.bf16.mxu0 0
        %547 = vmatpush1.bf16.msra.mxu0 0
        %548 = vmatprep.subr.bf16.mxu0 0
        %549 = vmatpush1.bf16.msra.mxu0 %v529
        %550 = vmatprep.subr.bf16.mxu0 0
        %551 = vmatpush1.bf16.msra.mxu0 %v528
        %552 = vmatprep.subr.bf16.mxu0 0
        %553 = vmatpush2.bf16.msra.mxu0 0
        %554 = vmatprep.subr.bf16.mxu0 0
        %555 = vmatpush2.bf16.msra.mxu0 0
        %556 = vmatprep.subr.bf16.mxu0 0
        %557 = vmatpush2.bf16.msra.mxu0 0
        %558 = vmatprep.subr.bf16.mxu0 0
        %559 = vmatpush2.bf16.msra.mxu0 0
        %560 = vmatprep.subr.bf16.mxu0 0
        %561 = vmatpush2.bf16.msra.mxu0 0
        %562 = vmatprep.subr.bf16.mxu0 0
        %563 = vmatpush2.bf16.msra.mxu0 0
        %564 = vmatprep.subr.bf16.mxu0 0
        %565 = vmatpush2.bf16.msra.mxu0 0
        %566 = vmatprep.subr.bf16.mxu0 0
        %567 = vmatpush2.bf16.msra.mxu0 0
        %568 = vmatprep.mubr.bf16.mxu0 0
        %569 = vmatmul.mubr.bf16.gmra.mxu0 %v534
        %v570 = vpop.f32.mrf.mxu0
        %v571 = vadd.f32 %v518, %v570
        %v572 = vpop.f32.mrf.mxu0
        %v573 = vpop.f32.mrf.mxu0
        %v574 = vadd.f32 %v518, %v573
        %v575 = vpop.f32.mrf.mxu0
        %576 = vdwg.mxu0
        %v577 = vpack.c.bf16 %v574, %v571
        %579 = vrot.lane.b32.xlu0 %v577, 96
        %v580 = vpop.permute.xlu0 %579
        %vm581 = vcmask 64512
        %v583 = vsel %vm581, %v577, 0
        %v586 = vsel %vm581, %v580, 0
        %588 = vmatprep.subr.bf16.mxu0 0
        %589 = vmatpush1.bf16.xpose.msra.mxu0 0
        %590 = vmatprep.subr.bf16.mxu0 0
        %591 = vmatpush1.bf16.xpose.msra.mxu0 0
        %592 = vmatprep.subr.bf16.mxu0 0
        %593 = vmatpush1.bf16.xpose.msra.mxu0 0
        %594 = vmatprep.subr.bf16.mxu0 0
        %595 = vmatpush1.bf16.xpose.msra.mxu0 0
        %596 = vmatprep.subr.bf16.mxu0 0
        %597 = vmatpush1.bf16.xpose.msra.mxu0 0
        %598 = vmatprep.subr.bf16.mxu0 0
        %599 = vmatpush1.bf16.xpose.msra.mxu0 0
        %600 = vmatprep.subr.bf16.mxu0 0
        %601 = vmatpush1.bf16.xpose.msra.mxu0 0
        %602 = vmatprep.subr.bf16.mxu0 0
        %603 = vmatpush1.bf16.xpose.msra.mxu0 %v586
        %604 = vmatprep.subr.bf16.mxu0 0
        %605 = vmatpush2.bf16.xpose.msra.mxu0 0
        %606 = vmatprep.subr.bf16.mxu0 0
        %607 = vmatpush2.bf16.xpose.msra.mxu0 0
        %608 = vmatprep.subr.bf16.mxu0 0
        %609 = vmatpush2.bf16.xpose.msra.mxu0 0
        %610 = vmatprep.subr.bf16.mxu0 0
        %611 = vmatpush2.bf16.xpose.msra.mxu0 0
        %612 = vmatprep.subr.bf16.mxu0 0
        %613 = vmatpush2.bf16.xpose.msra.mxu0 0
        %614 = vmatprep.subr.bf16.mxu0 0
        %615 = vmatpush2.bf16.xpose.msra.mxu0 0
        %616 = vmatprep.subr.bf16.mxu0 0
        %617 = vmatpush2.bf16.xpose.msra.mxu0 0
        %618 = vmatprep.subr.bf16.mxu0 0
        %619 = vmatpush2.bf16.xpose.msra.mxu0 0
        %620 = vmatprep.mubr.bf16.mxu0 0
        %621 = vmatmul.mubr.bf16.gmra.mxu0 %v583
        %v622 = vpop.f32.mrf.mxu0
        %v623 = vadd.f32 0.0, %v622
        %v624 = vpop.f32.mrf.mxu0
        %v625 = vpop.f32.mrf.mxu0
        %v626 = vpop.f32.mrf.mxu0
        %627 = vdwg.mxu0
        %v628 = vsel %vm581, %v623, -inf
        %629 = vmax.xlane.f32.xlu0 %v628
        %v630 = vpop.xlane.xlu0 %629
        %v631 = vsub.f32 %v623, %v630
        %v632 = vmul.f32 %v631, 1.442695
        %v633 = vpow.pop %v632
        %v634 = vsel %vm581, %v633, 0.0
        %635 = vadd.xlane.f32.xlu0 %v634
        %v636 = vpop.xlane.xlu0 %635
        %v637 = vrcp.pop %v636
        %v638 = vmul.f32 %v633, %v637
        %v639 = vpack.c.bf16 %v638, %v638
        %640 = vrot.lane.b32.xlu0 %v577, 64
        %v641 = vpop.permute.xlu0 %640
        %v643 = vsel %vm581, %v639, 0
        %vm645 = vcmask 1043456
        %v647 = vsel %vm645, %v641, 0
        %649 = vmatprep.subr.bf16.mxu0 0
        %650 = vmatpush1.bf16.msra.mxu0 0
        %651 = vmatprep.subr.bf16.mxu0 0
        %652 = vmatpush1.bf16.msra.mxu0 0
        %653 = vmatprep.subr.bf16.mxu0 0
        %654 = vmatpush1.bf16.msra.mxu0 0
        %655 = vmatprep.subr.bf16.mxu0 0
        %656 = vmatpush1.bf16.msra.mxu0 0
        %657 = vmatprep.subr.bf16.mxu0 0
        %658 = vmatpush1.bf16.msra.mxu0 0
        %659 = vmatprep.subr.bf16.mxu0 0
        %660 = vmatpush1.bf16.msra.mxu0 0
        %661 = vmatprep.subr.bf16.mxu0 0
        %662 = vmatpush1.bf16.msra.mxu0 0
        %663 = vmatprep.subr.bf16.mxu0 0
        %664 = vmatpush1.bf16.msra.mxu0 %v647
        %665 = vmatprep.subr.bf16.mxu0 0
        %666 = vmatpush2.bf16.msra.mxu0 0
        %667 = vmatprep.subr.bf16.mxu0 0
        %668 = vmatpush2.bf16.msra.mxu0 0
        %669 = vmatprep.subr.bf16.mxu0 0
        %670 = vmatpush2.bf16.msra.mxu0 0
        %671 = vmatprep.subr.bf16.mxu0 0
        %672 = vmatpush2.bf16.msra.mxu0 0
        %673 = vmatprep.subr.bf16.mxu0 0
        %674 = vmatpush2.bf16.msra.mxu0 0
        %675 = vmatprep.subr.bf16.mxu0 0
        %676 = vmatpush2.bf16.msra.mxu0 0
        %677 = vmatprep.subr.bf16.mxu0 0
        %678 = vmatpush2.bf16.msra.mxu0 0
        %679 = vmatprep.subr.bf16.mxu0 0
        %680 = vmatpush2.bf16.msra.mxu0 0
        %681 = vmatprep.mubr.bf16.mxu0 0
        %682 = vmatmul.mubr.bf16.gmra.mxu0 %v643
        %v683 = vpop.f32.mrf.mxu0
        %v684 = vadd.f32 0.0, %v683
        %v685 = vpop.f32.mrf.mxu0
        %v686 = vpop.f32.mrf.mxu0
        %v687 = vpop.f32.mrf.mxu0
        %688 = vdwg.mxu0
        %689 = vst.msk [vmem:[#allocation2] sm:$0xff] %vm581, %v684
        %690 = vrot.lane.b32.xlu0 %v577, 120
        %v691 = vpop.permute.xlu0 %690
        %692 = vrot.lane.b32.xlu0 %v577, 88
        %v693 = vpop.permute.xlu0 %692
        %v695 = vsel %vm581, %v691, 0
        %v698 = vsel %vm581, %v693, 0
        %700 = vmatprep.subr.bf16.mxu0 0
        %701 = vmatpush1.bf16.xpose.msra.mxu0 0
        %702 = vmatprep.subr.bf16.mxu0 0
        %703 = vmatpush1.bf16.xpose.msra.mxu0 0
        %704 = vmatprep.subr.bf16.mxu0 0
        %705 = vmatpush1.bf16.xpose.msra.mxu0 0
        %706 = vmatprep.subr.bf16.mxu0 0
        %707 = vmatpush1.bf16.xpose.msra.mxu0 0
        %708 = vmatprep.subr.bf16.mxu0 0
        %709 = vmatpush1.bf16.xpose.msra.mxu0 0
        %710 = vmatprep.subr.bf16.mxu0 0
        %711 = vmatpush1.bf16.xpose.msra.mxu0 0
        %712 = vmatprep.subr.bf16.mxu0 0
        %713 = vmatpush1.bf16.xpose.msra.mxu0 0
        %714 = vmatprep.subr.bf16.mxu0 0
        %715 = vmatpush1.bf16.xpose.msra.mxu0 %v698
        %716 = vmatprep.subr.bf16.mxu0 0
        %717 = vmatpush2.bf16.xpose.msra.mxu0 0
        %718 = vmatprep.subr.bf16.mxu0 0
        %719 = vmatpush2.bf16.xpose.msra.mxu0 0
        %720 = vmatprep.subr.bf16.mxu0 0
        %721 = vmatpush2.bf16.xpose.msra.mxu0 0
        %722 = vmatprep.subr.bf16.mxu0 0
        %723 = vmatpush2.bf16.xpose.msra.mxu0 0
        %724 = vmatprep.subr.bf16.mxu0 0
        %725 = vmatpush2.bf16.xpose.msra.mxu0 0
        %726 = vmatprep.subr.bf16.mxu0 0
        %727 = vmatpush2.bf16.xpose.msra.mxu0 0
        %728 = vmatprep.subr.bf16.mxu0 0
        %729 = vmatpush2.bf16.xpose.msra.mxu0 0
        %730 = vmatprep.subr.bf16.mxu0 0
        %731 = vmatpush2.bf16.xpose.msra.mxu0 0
        %732 = vmatprep.mubr.bf16.mxu0 0
        %733 = vmatmul.mubr.bf16.gmra.mxu0 %v695
        %v734 = vpop.f32.mrf.mxu0
        %v735 = vadd.f32 0.0, %v734
        %v736 = vpop.f32.mrf.mxu0
        %v737 = vpop.f32.mrf.mxu0
        %v738 = vpop.f32.mrf.mxu0
        %739 = vdwg.mxu0
        %v740 = vsel %vm581, %v735, -inf
        %741 = vmax.xlane.f32.xlu0 %v740
        %v742 = vpop.xlane.xlu0 %741
        %v743 = vsub.f32 %v735, %v742
        %v744 = vmul.f32 %v743, 1.442695
        %v745 = vpow.pop %v744
        %v746 = vsel %vm581, %v745, 0.0
        %747 = vadd.xlane.f32.xlu0 %v746
        %v748 = vpop.xlane.xlu0 %747
        %v749 = vrcp.pop %v748
        %v750 = vmul.f32 %v745, %v749
        %v751 = vpack.c.bf16 %v750, %v750
        %752 = vrot.lane.b32.xlu0 %v577, 56
        %v753 = vpop.permute.xlu0 %752
        %v755 = vsel %vm581, %v751, 0
        %v758 = vsel %vm645, %v753, 0
        %760 = vmatprep.subr.bf16.mxu0 0
        %761 = vmatpush1.bf16.msra.mxu0 0
        %762 = vmatprep.subr.bf16.mxu0 0
        %763 = vmatpush1.bf16.msra.mxu0 0
        %764 = vmatprep.subr.bf16.mxu0 0
        %765 = vmatpush1.bf16.msra.mxu0 0
        %766 = vmatprep.subr.bf16.mxu0 0
        %767 = vmatpush1.bf16.msra.mxu0 0
        %768 = vmatprep.subr.bf16.mxu0 0
        %769 = vmatpush1.bf16.msra.mxu0 0
        %770 = vmatprep.subr.bf16.mxu0 0
        %771 = vmatpush1.bf16.msra.mxu0 0
        %772 = vmatprep.subr.bf16.mxu0 0
        %773 = vmatpush1.bf16.msra.mxu0 0
        %774 = vmatprep.subr.bf16.mxu0 0
        %775 = vmatpush1.bf16.msra.mxu0 %v758
        %776 = vmatprep.subr.bf16.mxu0 0
        %777 = vmatpush2.bf16.msra.mxu0 0
        %778 = vmatprep.subr.bf16.mxu0 0
        %779 = vmatpush2.bf16.msra.mxu0 0
        %780 = vmatprep.subr.bf16.mxu0 0
        %781 = vmatpush2.bf16.msra.mxu0 0
        %782 = vmatprep.subr.bf16.mxu0 0
        %783 = vmatpush2.bf16.msra.mxu0 0
        %784 = vmatprep.subr.bf16.mxu0 0
        %785 = vmatpush2.bf16.msra.mxu0 0
        %786 = vmatprep.subr.bf16.mxu0 0
        %787 = vmatpush2.bf16.msra.mxu0 0
        %788 = vmatprep.subr.bf16.mxu0 0
        %789 = vmatpush2.bf16.msra.mxu0 0
        %790 = vmatprep.subr.bf16.mxu0 0
        %791 = vmatpush2.bf16.msra.mxu0 0
        %792 = vmatprep.mubr.bf16.mxu0 0
        %793 = vmatmul.mubr.bf16.gmra.mxu0 %v755
        %v794 = vpop.f32.mrf.mxu0
        %v795 = vadd.f32 0.0, %v794
        %v796 = vpop.f32.mrf.mxu0
        %v797 = vpop.f32.mrf.mxu0
        %v798 = vpop.f32.mrf.mxu0
        %799 = vdwg.mxu0
        %801 = vrot.lane.b32.xlu0 %v795, 8
        %v802 = vpop.permute.xlu0 %801
        %vm804 = vcmask 130112
        %805 = vst.msk [vmem:[#allocation2] sm:$0xff] %vm804, %v802
        %806 = vrot.lane.b32.xlu0 %v577, 112
        %v807 = vpop.permute.xlu0 %806
        %808 = vrot.lane.b32.xlu0 %v577, 80
        %v809 = vpop.permute.xlu0 %808
        %v811 = vsel %vm581, %v807, 0
        %v814 = vsel %vm581, %v809, 0
        %816 = vmatprep.subr.bf16.mxu0 0
        %817 = vmatpush1.bf16.xpose.msra.mxu0 0
        %818 = vmatprep.subr.bf16.mxu0 0
        %819 = vmatpush1.bf16.xpose.msra.mxu0 0
        %820 = vmatprep.subr.bf16.mxu0 0
        %821 = vmatpush1.bf16.xpose.msra.mxu0 0
        %822 = vmatprep.subr.bf16.mxu0 0
        %823 = vmatpush1.bf16.xpose.msra.mxu0 0
        %824 = vmatprep.subr.bf16.mxu0 0
        %825 = vmatpush1.bf16.xpose.msra.mxu0 0
        %826 = vmatprep.subr.bf16.mxu0 0
        %827 = vmatpush1.bf16.xpose.msra.mxu0 0
        %828 = vmatprep.subr.bf16.mxu0 0
        %829 = vmatpush1.bf16.xpose.msra.mxu0 0
        %830 = vmatprep.subr.bf16.mxu0 0
        %831 = vmatpush1.bf16.xpose.msra.mxu0 %v814
        %832 = vmatprep.subr.bf16.mxu0 0
        %833 = vmatpush2.bf16.xpose.msra.mxu0 0
        %834 = vmatprep.subr.bf16.mxu0 0
        %835 = vmatpush2.bf16.xpose.msra.mxu0 0
        %836 = vmatprep.subr.bf16.mxu0 0
        %837 = vmatpush2.bf16.xpose.msra.mxu0 0
        %838 = vmatprep.subr.bf16.mxu0 0
        %839 = vmatpush2.bf16.xpose.msra.mxu0 0
        %840 = vmatprep.subr.bf16.mxu0 0
        %841 = vmatpush2.bf16.xpose.msra.mxu0 0
        %842 = vmatprep.subr.bf16.mxu0 0
        %843 = vmatpush2.bf16.xpose.msra.mxu0 0
        %844 = vmatprep.subr.bf16.mxu0 0
        %845 = vmatpush2.bf16.xpose.msra.mxu0 0
        %846 = vmatprep.subr.bf16.mxu0 0
        %847 = vmatpush2.bf16.xpose.msra.mxu0 0
        %848 = vmatprep.mubr.bf16.mxu0 0
        %849 = vmatmul.mubr.bf16.gmra.mxu0 %v811
        %v850 = vpop.f32.mrf.mxu0
        %v851 = vadd.f32 0.0, %v850
        %v852 = vpop.f32.mrf.mxu0
        %v853 = vpop.f32.mrf.mxu0
        %v854 = vpop.f32.mrf.mxu0
        %855 = vdwg.mxu0
        %v856 = vsel %vm581, %v851, -inf
        %857 = vmax.xlane.f32.xlu0 %v856
        %v858 = vpop.xlane.xlu0 %857
        %v859 = vsub.f32 %v851, %v858
        %v860 = vmul.f32 %v859, 1.442695
        %v861 = vpow.pop %v860
        %v862 = vsel %vm581, %v861, 0.0
        %863 = vadd.xlane.f32.xlu0 %v862
        %v864 = vpop.xlane.xlu0 %863
        %v865 = vrcp.pop %v864
        %v866 = vmul.f32 %v861, %v865
        %v867 = vpack.c.bf16 %v866, %v866
        %868 = vrot.lane.b32.xlu0 %v577, 48
        %v869 = vpop.permute.xlu0 %868
        %v871 = vsel %vm581, %v867, 0
        %v874 = vsel %vm645, %v869, 0
        %876 = vmatprep.subr.bf16.mxu0 0
        %877 = vmatpush1.bf16.msra.mxu0 0
        %878 = vmatprep.subr.bf16.mxu0 0
        %879 = vmatpush1.bf16.msra.mxu0 0
        %880 = vmatprep.subr.bf16.mxu0 0
        %881 = vmatpush1.bf16.msra.mxu0 0
        %882 = vmatprep.subr.bf16.mxu0 0
        %883 = vmatpush1.bf16.msra.mxu0 0
        %884 = vmatprep.subr.bf16.mxu0 0
        %885 = vmatpush1.bf16.msra.mxu0 0
        %886 = vmatprep.subr.bf16.mxu0 0
        %887 = vmatpush1.bf16.msra.mxu0 0
        %888 = vmatprep.subr.bf16.mxu0 0
        %889 = vmatpush1.bf16.msra.mxu0 0
        %890 = vmatprep.subr.bf16.mxu0 0
        %891 = vmatpush1.bf16.msra.mxu0 %v874
        %892 = vmatprep.subr.bf16.mxu0 0
        %893 = vmatpush2.bf16.msra.mxu0 0
        %894 = vmatprep.subr.bf16.mxu0 0
        %895 = vmatpush2.bf16.msra.mxu0 0
        %896 = vmatprep.subr.bf16.mxu0 0
        %897 = vmatpush2.bf16.msra.mxu0 0
        %898 = vmatprep.subr.bf16.mxu0 0
        %899 = vmatpush2.bf16.msra.mxu0 0
        %900 = vmatprep.subr.bf16.mxu0 0
        %901 = vmatpush2.bf16.msra.mxu0 0
        %902 = vmatprep.subr.bf16.mxu0 0
        %903 = vmatpush2.bf16.msra.mxu0 0
        %904 = vmatprep.subr.bf16.mxu0 0
        %905 = vmatpush2.bf16.msra.mxu0 0
        %906 = vmatprep.subr.bf16.mxu0 0
        %907 = vmatpush2.bf16.msra.mxu0 0
        %908 = vmatprep.mubr.bf16.mxu0 0
        %909 = vmatmul.mubr.bf16.gmra.mxu0 %v871
        %v910 = vpop.f32.mrf.mxu0
        %v911 = vadd.f32 0.0, %v910
        %v912 = vpop.f32.mrf.mxu0
        %v913 = vpop.f32.mrf.mxu0
        %v914 = vpop.f32.mrf.mxu0
        %915 = vdwg.mxu0
        %917 = vrot.lane.b32.xlu0 %v911, 16
        %v918 = vpop.permute.xlu0 %917
        %vm920 = vcmask 195712
        %921 = vst.msk [vmem:[#allocation2] sm:$0xff] %vm920, %v918
        %922 = vrot.lane.b32.xlu0 %v577, 104
        %v923 = vpop.permute.xlu0 %922
        %924 = vrot.lane.b32.xlu0 %v577, 72
        %v925 = vpop.permute.xlu0 %924
        %v927 = vsel %vm581, %v923, 0
        %v930 = vsel %vm581, %v925, 0
        %932 = vmatprep.subr.bf16.mxu0 0
        %933 = vmatpush1.bf16.xpose.msra.mxu0 0
        %934 = vmatprep.subr.bf16.mxu0 0
        %935 = vmatpush1.bf16.xpose.msra.mxu0 0
        %936 = vmatprep.subr.bf16.mxu0 0
        %937 = vmatpush1.bf16.xpose.msra.mxu0 0
        %938 = vmatprep.subr.bf16.mxu0 0
        %939 = vmatpush1.bf16.xpose.msra.mxu0 0
        %940 = vmatprep.subr.bf16.mxu0 0
        %941 = vmatpush1.bf16.xpose.msra.mxu0 0
        %942 = vmatprep.subr.bf16.mxu0 0
        %943 = vmatpush1.bf16.xpose.msra.mxu0 0
        %944 = vmatprep.subr.bf16.mxu0 0
        %945 = vmatpush1.bf16.xpose.msra.mxu0 0
        %946 = vmatprep.subr.bf16.mxu0 0
        %947 = vmatpush1.bf16.xpose.msra.mxu0 %v930
        %948 = vmatprep.subr.bf16.mxu0 0
        %949 = vmatpush2.bf16.xpose.msra.mxu0 0
        %950 = vmatprep.subr.bf16.mxu0 0
        %951 = vmatpush2.bf16.xpose.msra.mxu0 0
        %952 = vmatprep.subr.bf16.mxu0 0
        %953 = vmatpush2.bf16.xpose.msra.mxu0 0
        %954 = vmatprep.subr.bf16.mxu0 0
        %955 = vmatpush2.bf16.xpose.msra.mxu0 0
        %956 = vmatprep.subr.bf16.mxu0 0
        %957 = vmatpush2.bf16.xpose.msra.mxu0 0
        %958 = vmatprep.subr.bf16.mxu0 0
        %959 = vmatpush2.bf16.xpose.msra.mxu0 0
        %960 = vmatprep.subr.bf16.mxu0 0
        %961 = vmatpush2.bf16.xpose.msra.mxu0 0
        %962 = vmatprep.subr.bf16.mxu0 0
        %963 = vmatpush2.bf16.xpose.msra.mxu0 0
        %964 = vmatprep.mubr.bf16.mxu0 0
        %965 = vmatmul.mubr.bf16.gmra.mxu0 %v927
        %v966 = vpop.f32.mrf.mxu0
        %v967 = vadd.f32 0.0, %v966
        %v968 = vpop.f32.mrf.mxu0
        %v969 = vpop.f32.mrf.mxu0
        %v970 = vpop.f32.mrf.mxu0
        %971 = vdwg.mxu0
        %v972 = vsel %vm581, %v967, -inf
        %973 = vmax.xlane.f32.xlu0 %v972
        %v974 = vpop.xlane.xlu0 %973
        %v975 = vsub.f32 %v967, %v974
        %v976 = vmul.f32 %v975, 1.442695
        %v977 = vpow.pop %v976
        %v978 = vsel %vm581, %v977, 0.0
        %979 = vadd.xlane.f32.xlu0 %v978
        %v980 = vpop.xlane.xlu0 %979
        %v981 = vrcp.pop %v980
        %v982 = vmul.f32 %v977, %v981
        %v983 = vpack.c.bf16 %v982, %v982
        %984 = vrot.lane.b32.xlu0 %v577, 40
        %v985 = vpop.permute.xlu0 %984
        %v987 = vsel %vm581, %v983, 0
        %v990 = vsel %vm645, %v985, 0
        %992 = vmatprep.subr.bf16.mxu0 0
        %993 = vmatpush1.bf16.msra.mxu0 0
        %994 = vmatprep.subr.bf16.mxu0 0
        %995 = vmatpush1.bf16.msra.mxu0 0
        %996 = vmatprep.subr.bf16.mxu0 0
        %997 = vmatpush1.bf16.msra.mxu0 0
        %998 = vmatprep.subr.bf16.mxu0 0
        %999 = vmatpush1.bf16.msra.mxu0 0
        %1000 = vmatprep.subr.bf16.mxu0 0
        %1001 = vmatpush1.bf16.msra.mxu0 0
        %1002 = vmatprep.subr.bf16.mxu0 0
        %1003 = vmatpush1.bf16.msra.mxu0 0
        %1004 = vmatprep.subr.bf16.mxu0 0
        %1005 = vmatpush1.bf16.msra.mxu0 0
        %1006 = vmatprep.subr.bf16.mxu0 0
        %1007 = vmatpush1.bf16.msra.mxu0 %v990
        %1008 = vmatprep.subr.bf16.mxu0 0
        %1009 = vmatpush2.bf16.msra.mxu0 0
        %1010 = vmatprep.subr.bf16.mxu0 0
        %1011 = vmatpush2.bf16.msra.mxu0 0
        %1012 = vmatprep.subr.bf16.mxu0 0
        %1013 = vmatpush2.bf16.msra.mxu0 0
        %1014 = vmatprep.subr.bf16.mxu0 0
        %1015 = vmatpush2.bf16.msra.mxu0 0
        %1016 = vmatprep.subr.bf16.mxu0 0
        %1017 = vmatpush2.bf16.msra.mxu0 0
        %1018 = vmatprep.subr.bf16.mxu0 0
        %1019 = vmatpush2.bf16.msra.mxu0 0
        %1020 = vmatprep.subr.bf16.mxu0 0
        %1021 = vmatpush2.bf16.msra.mxu0 0
        %1022 = vmatprep.subr.bf16.mxu0 0
        %1023 = vmatpush2.bf16.msra.mxu0 0
        %1024 = vmatprep.mubr.bf16.mxu0 0
        %1025 = vmatmul.mubr.bf16.gmra.mxu0 %v987
        %v1026 = vpop.f32.mrf.mxu0
        %v1027 = vadd.f32 0.0, %v1026
        %v1028 = vpop.f32.mrf.mxu0
        %v1029 = vpop.f32.mrf.mxu0
        %v1030 = vpop.f32.mrf.mxu0
        %1031 = vdwg.mxu0
        %1033 = vrot.lane.b32.xlu0 %v1027, 24
        %v1034 = vpop.permute.xlu0 %1033
        %vm1036 = vcmask 261312
        %1037 = vst.msk [vmem:[#allocation2] sm:$0xff] %vm1036, %v1034
        %v1038 = vrot.slane %v577, 4
        %1039 = vrot.lane.b32.xlu0 %v1038, 96
        %v1040 = vpop.permute.xlu0 %1039
        %v1042 = vsel %vm581, %v1038, 0
        %v1045 = vsel %vm581, %v1040, 0
        %1047 = vmatprep.subr.bf16.mxu0 0
        %1048 = vmatpush1.bf16.xpose.msra.mxu0 0
        %1049 = vmatprep.subr.bf16.mxu0 0
        %1050 = vmatpush1.bf16.xpose.msra.mxu0 0
        %1051 = vmatprep.subr.bf16.mxu0 0
        %1052 = vmatpush1.bf16.xpose.msra.mxu0 0
        %1053 = vmatprep.subr.bf16.mxu0 0
        %1054 = vmatpush1.bf16.xpose.msra.mxu0 0
        %1055 = vmatprep.subr.bf16.mxu0 0
        %1056 = vmatpush1.bf16.xpose.msra.mxu0 0
        %1057 = vmatprep.subr.bf16.mxu0 0
        %1058 = vmatpush1.bf16.xpose.msra.mxu0 0
        %1059 = vmatprep.subr.bf16.mxu0 0
        %1060 = vmatpush1.bf16.xpose.msra.mxu0 0
        %1061 = vmatprep.subr.bf16.mxu0 0
        %1062 = vmatpush1.bf16.xpose.msra.mxu0 %v1045
        %1063 = vmatprep.subr.bf16.mxu0 0
        %1064 = vmatpush2.bf16.xpose.msra.mxu0 0
        %1065 = vmatprep.subr.bf16.mxu0 0
        %1066 = vmatpush2.bf16.xpose.msra.mxu0 0
        %1067 = vmatprep.subr.bf16.mxu0 0
        %1068 = vmatpush2.bf16.xpose.msra.mxu0 0
        %1069 = vmatprep.subr.bf16.mxu0 0
        %1070 = vmatpush2.bf16.xpose.msra.mxu0 0
        %1071 = vmatprep.subr.bf16.mxu0 0
        %1072 = vmatpush2.bf16.xpose.msra.mxu0 0
        %1073 = vmatprep.subr.bf16.mxu0 0
        %1074 = vmatpush2.bf16.xpose.msra.mxu0 0
        %1075 = vmatprep.subr.bf16.mxu0 0
        %1076 = vmatpush2.bf16.xpose.msra.mxu0 0
        %1077 = vmatprep.subr.bf16.mxu0 0
        %1078 = vmatpush2.bf16.xpose.msra.mxu0 0
        %1079 = vmatprep.mubr.bf16.mxu0 0
        %1080 = vmatmul.mubr.bf16.gmra.mxu0 %v1042
        %v1081 = vpop.f32.mrf.mxu0
        %v1082 = vadd.f32 0.0, %v1081
        %v1083 = vpop.f32.mrf.mxu0
        %v1084 = vpop.f32.mrf.mxu0
        %v1085 = vpop.f32.mrf.mxu0
        %1086 = vdwg.mxu0
        %v1087 = vsel %vm581, %v1082, -inf
        %1088 = vmax.xlane.f32.xlu0 %v1087
        %v1089 = vpop.xlane.xlu0 %1088
        %v1090 = vsub.f32 %v1082, %v1089
        %v1091 = vmul.f32 %v1090, 1.442695
        %v1092 = vpow.pop %v1091
        %v1093 = vsel %vm581, %v1092, 0.0
        %1094 = vadd.xlane.f32.xlu0 %v1093
        %v1095 = vpop.xlane.xlu0 %1094
        %v1096 = vrcp.pop %v1095
        %v1097 = vmul.f32 %v1092, %v1096
        %v1098 = vpack.c.bf16 %v1097, %v1097
        %1099 = vrot.lane.b32.xlu0 %v1038, 64
        %v1100 = vpop.permute.xlu0 %1099
        %v1102 = vsel %vm581, %v1098, 0
        %v1105 = vsel %vm645, %v1100, 0
        %1107 = vmatprep.subr.bf16.mxu0 0
        %1108 = vmatpush1.bf16.msra.mxu0 0
        %1109 = vmatprep.subr.bf16.mxu0 0
        %1110 = vmatpush1.bf16.msra.mxu0 0
        %1111 = vmatprep.subr.bf16.mxu0 0
        %1112 = vmatpush1.bf16.msra.mxu0 0
        %1113 = vmatprep.subr.bf16.mxu0 0
        %1114 = vmatpush1.bf16.msra.mxu0 0
        %1115 = vmatprep.subr.bf16.mxu0 0
        %1116 = vmatpush1.bf16.msra.mxu0 0
        %1117 = vmatprep.subr.bf16.mxu0 0
        %1118 = vmatpush1.bf16.msra.mxu0 0
        %1119 = vmatprep.subr.bf16.mxu0 0
        %1120 = vmatpush1.bf16.msra.mxu0 0
        %1121 = vmatprep.subr.bf16.mxu0 0
        %1122 = vmatpush1.bf16.msra.mxu0 %v1105
        %1123 = vmatprep.subr.bf16.mxu0 0
        %1124 = vmatpush2.bf16.msra.mxu0 0
        %1125 = vmatprep.subr.bf16.mxu0 0
        %1126 = vmatpush2.bf16.msra.mxu0 0
        %1127 = vmatprep.subr.bf16.mxu0 0
        %1128 = vmatpush2.bf16.msra.mxu0 0
        %1129 = vmatprep.subr.bf16.mxu0 0
        %1130 = vmatpush2.bf16.msra.mxu0 0
        %1131 = vmatprep.subr.bf16.mxu0 0
        %1132 = vmatpush2.bf16.msra.mxu0 0
        %1133 = vmatprep.subr.bf16.mxu0 0
        %1134 = vmatpush2.bf16.msra.mxu0 0
        %1135 = vmatprep.subr.bf16.mxu0 0
        %1136 = vmatpush2.bf16.msra.mxu0 0
        %1137 = vmatprep.subr.bf16.mxu0 0
        %1138 = vmatpush2.bf16.msra.mxu0 0
        %1139 = vmatprep.mubr.bf16.mxu0 0
        %1140 = vmatmul.mubr.bf16.gmra.mxu0 %v1102
        %v1141 = vpop.f32.mrf.mxu0
        %v1142 = vadd.f32 0.0, %v1141
        %v1143 = vpop.f32.mrf.mxu0
        %v1144 = vpop.f32.mrf.mxu0
        %v1145 = vpop.f32.mrf.mxu0
        %1146 = vdwg.mxu0
        %1147 = vst.msk [vmem:[#allocation2 + $0x8] sm:$0xff] %vm581, %v1142
        %1148 = vrot.lane.b32.xlu0 %v1038, 120
        %v1149 = vpop.permute.xlu0 %1148
        %1150 = vrot.lane.b32.xlu0 %v1038, 88
        %v1151 = vpop.permute.xlu0 %1150
        %v1153 = vsel %vm581, %v1149, 0
        %v1156 = vsel %vm581, %v1151, 0
        %1158 = vmatprep.subr.bf16.mxu0 0
        %1159 = vmatpush1.bf16.xpose.msra.mxu0 0
        %1160 = vmatprep.subr.bf16.mxu0 0
        %1161 = vmatpush1.bf16.xpose.msra.mxu0 0
        %1162 = vmatprep.subr.bf16.mxu0 0
        %1163 = vmatpush1.bf16.xpose.msra.mxu0 0
        %1164 = vmatprep.subr.bf16.mxu0 0
        %1165 = vmatpush1.bf16.xpose.msra.mxu0 0
        %1166 = vmatprep.subr.bf16.mxu0 0
        %1167 = vmatpush1.bf16.xpose.msra.mxu0 0
        %1168 = vmatprep.subr.bf16.mxu0 0
        %1169 = vmatpush1.bf16.xpose.msra.mxu0 0
        %1170 = vmatprep.subr.bf16.mxu0 0
        %1171 = vmatpush1.bf16.xpose.msra.mxu0 0
        %1172 = vmatprep.subr.bf16.mxu0 0
        %1173 = vmatpush1.bf16.xpose.msra.mxu0 %v1156
        %1174 = vmatprep.subr.bf16.mxu0 0
        %1175 = vmatpush2.bf16.xpose.msra.mxu0 0
        %1176 = vmatprep.subr.bf16.mxu0 0
        %1177 = vmatpush2.bf16.xpose.msra.mxu0 0
        %1178 = vmatprep.subr.bf16.mxu0 0
        %1179 = vmatpush2.bf16.xpose.msra.mxu0 0
        %1180 = vmatprep.subr.bf16.mxu0 0
        %1181 = vmatpush2.bf16.xpose.msra.mxu0 0
        %1182 = vmatprep.subr.bf16.mxu0 0
        %1183 = vmatpush2.bf16.xpose.msra.mxu0 0
        %1184 = vmatprep.subr.bf16.mxu0 0
        %1185 = vmatpush2.bf16.xpose.msra.mxu0 0
        %1186 = vmatprep.subr.bf16.mxu0 0
        %1187 = vmatpush2.bf16.xpose.msra.mxu0 0
        %1188 = vmatprep.subr.bf16.mxu0 0
        %1189 = vmatpush2.bf16.xpose.msra.mxu0 0
        %1190 = vmatprep.mubr.bf16.mxu0 0
        %1191 = vmatmul.mubr.bf16.gmra.mxu0 %v1153
        %v1192 = vpop.f32.mrf.mxu0
        %v1193 = vadd.f32 0.0, %v1192
        %v1194 = vpop.f32.mrf.mxu0
        %v1195 = vpop.f32.mrf.mxu0
        %v1196 = vpop.f32.mrf.mxu0
        %1197 = vdwg.mxu0
        %v1198 = vsel %vm581, %v1193, -inf
        %1199 = vmax.xlane.f32.xlu0 %v1198
        %v1200 = vpop.xlane.xlu0 %1199
        %v1201 = vsub.f32 %v1193, %v1200
        %v1202 = vmul.f32 %v1201, 1.442695
        %v1203 = vpow.pop %v1202
        %v1204 = vsel %vm581, %v1203, 0.0
        %1205 = vadd.xlane.f32.xlu0 %v1204
        %v1206 = vpop.xlane.xlu0 %1205
        %v1207 = vrcp.pop %v1206
        %v1208 = vmul.f32 %v1203, %v1207
        %v1209 = vpack.c.bf16 %v1208, %v1208
        %1210 = vrot.lane.b32.xlu0 %v1038, 56
        %v1211 = vpop.permute.xlu0 %1210
        %v1213 = vsel %vm581, %v1209, 0
        %v1216 = vsel %vm645, %v1211, 0
        %1218 = vmatprep.subr.bf16.mxu0 0
        %1219 = vmatpush1.bf16.msra.mxu0 0
        %1220 = vmatprep.subr.bf16.mxu0 0
        %1221 = vmatpush1.bf16.msra.mxu0 0
        %1222 = vmatprep.subr.bf16.mxu0 0
        %1223 = vmatpush1.bf16.msra.mxu0 0
        %1224 = vmatprep.subr.bf16.mxu0 0
        %1225 = vmatpush1.bf16.msra.mxu0 0
        %1226 = vmatprep.subr.bf16.mxu0 0
        %1227 = vmatpush1.bf16.msra.mxu0 0
        %1228 = vmatprep.subr.bf16.mxu0 0
        %1229 = vmatpush1.bf16.msra.mxu0 0
        %1230 = vmatprep.subr.bf16.mxu0 0
        %1231 = vmatpush1.bf16.msra.mxu0 0
        %1232 = vmatprep.subr.bf16.mxu0 0
        %1233 = vmatpush1.bf16.msra.mxu0 %v1216
        %1234 = vmatprep.subr.bf16.mxu0 0
        %1235 = vmatpush2.bf16.msra.mxu0 0
        %1236 = vmatprep.subr.bf16.mxu0 0
        %1237 = vmatpush2.bf16.msra.mxu0 0
        %1238 = vmatprep.subr.bf16.mxu0 0
        %1239 = vmatpush2.bf16.msra.mxu0 0
        %1240 = vmatprep.subr.bf16.mxu0 0
        %1241 = vmatpush2.bf16.msra.mxu0 0
        %1242 = vmatprep.subr.bf16.mxu0 0
        %1243 = vmatpush2.bf16.msra.mxu0 0
        %1244 = vmatprep.subr.bf16.mxu0 0
        %1245 = vmatpush2.bf16.msra.mxu0 0
        %1246 = vmatprep.subr.bf16.mxu0 0
        %1247 = vmatpush2.bf16.msra.mxu0 0
        %1248 = vmatprep.subr.bf16.mxu0 0
        %1249 = vmatpush2.bf16.msra.mxu0 0
        %1250 = vmatprep.mubr.bf16.mxu0 0
        %1251 = vmatmul.mubr.bf16.gmra.mxu0 %v1213
        %v1252 = vpop.f32.mrf.mxu0
        %v1253 = vadd.f32 0.0, %v1252
        %v1254 = vpop.f32.mrf.mxu0
        %v1255 = vpop.f32.mrf.mxu0
        %v1256 = vpop.f32.mrf.mxu0
        %1257 = vdwg.mxu0
        %1259 = vrot.lane.b32.xlu0 %v1253, 8
        %v1260 = vpop.permute.xlu0 %1259
        %1262 = vst.msk [vmem:[#allocation2 + $0x8] sm:$0xff] %vm804, %v1260
        %1263 = vrot.lane.b32.xlu0 %v1038, 112
        %v1264 = vpop.permute.xlu0 %1263
        %1265 = vrot.lane.b32.xlu0 %v1038, 80
        %v1266 = vpop.permute.xlu0 %1265
        %v1268 = vsel %vm581, %v1264, 0
        %v1271 = vsel %vm581, %v1266, 0
        %1273 = vmatprep.subr.bf16.mxu0 0
        %1274 = vmatpush1.bf16.xpose.msra.mxu0 0
        %1275 = vmatprep.subr.bf16.mxu0 0
        %1276 = vmatpush1.bf16.xpose.msra.mxu0 0
        %1277 = vmatprep.subr.bf16.mxu0 0
        %1278 = vmatpush1.bf16.xpose.msra.mxu0 0
        %1279 = vmatprep.subr.bf16.mxu0 0
        %1280 = vmatpush1.bf16.xpose.msra.mxu0 0
        %1281 = vmatprep.subr.bf16.mxu0 0
        %1282 = vmatpush1.bf16.xpose.msra.mxu0 0
        %1283 = vmatprep.subr.bf16.mxu0 0
        %1284 = vmatpush1.bf16.xpose.msra.mxu0 0
        %1285 = vmatprep.subr.bf16.mxu0 0
        %1286 = vmatpush1.bf16.xpose.msra.mxu0 0
        %1287 = vmatprep.subr.bf16.mxu0 0
        %1288 = vmatpush1.bf16.xpose.msra.mxu0 %v1271
        %1289 = vmatprep.subr.bf16.mxu0 0
        %1290 = vmatpush2.bf16.xpose.msra.mxu0 0
        %1291 = vmatprep.subr.bf16.mxu0 0
        %1292 = vmatpush2.bf16.xpose.msra.mxu0 0
        %1293 = vmatprep.subr.bf16.mxu0 0
        %1294 = vmatpush2.bf16.xpose.msra.mxu0 0
        %1295 = vmatprep.subr.bf16.mxu0 0
        %1296 = vmatpush2.bf16.xpose.msra.mxu0 0
        %1297 = vmatprep.subr.bf16.mxu0 0
        %1298 = vmatpush2.bf16.xpose.msra.mxu0 0
        %1299 = vmatprep.subr.bf16.mxu0 0
        %1300 = vmatpush2.bf16.xpose.msra.mxu0 0
        %1301 = vmatprep.subr.bf16.mxu0 0
        %1302 = vmatpush2.bf16.xpose.msra.mxu0 0
        %1303 = vmatprep.subr.bf16.mxu0 0
        %1304 = vmatpush2.bf16.xpose.msra.mxu0 0
        %1305 = vmatprep.mubr.bf16.mxu0 0
        %1306 = vmatmul.mubr.bf16.gmra.mxu0 %v1268
        %v1307 = vpop.f32.mrf.mxu0
        %v1308 = vadd.f32 0.0, %v1307
        %v1309 = vpop.f32.mrf.mxu0
        %v1310 = vpop.f32.mrf.mxu0
        %v1311 = vpop.f32.mrf.mxu0
        %1312 = vdwg.mxu0
        %v1313 = vsel %vm581, %v1308, -inf
        %1314 = vmax.xlane.f32.xlu0 %v1313
        %v1315 = vpop.xlane.xlu0 %1314
        %v1316 = vsub.f32 %v1308, %v1315
        %v1317 = vmul.f32 %v1316, 1.442695
        %v1318 = vpow.pop %v1317
        %v1319 = vsel %vm581, %v1318, 0.0
        %1320 = vadd.xlane.f32.xlu0 %v1319
        %v1321 = vpop.xlane.xlu0 %1320
        %v1322 = vrcp.pop %v1321
        %v1323 = vmul.f32 %v1318, %v1322
        %v1324 = vpack.c.bf16 %v1323, %v1323
        %1325 = vrot.lane.b32.xlu0 %v1038, 48
        %v1326 = vpop.permute.xlu0 %1325
        %v1328 = vsel %vm581, %v1324, 0
        %v1331 = vsel %vm645, %v1326, 0
        %1333 = vmatprep.subr.bf16.mxu0 0
        %1334 = vmatpush1.bf16.msra.mxu0 0
        %1335 = vmatprep.subr.bf16.mxu0 0
        %1336 = vmatpush1.bf16.msra.mxu0 0
        %1337 = vmatprep.subr.bf16.mxu0 0
        %1338 = vmatpush1.bf16.msra.mxu0 0
        %1339 = vmatprep.subr.bf16.mxu0 0
        %1340 = vmatpush1.bf16.msra.mxu0 0
        %1341 = vmatprep.subr.bf16.mxu0 0
        %1342 = vmatpush1.bf16.msra.mxu0 0
        %1343 = vmatprep.subr.bf16.mxu0 0
        %1344 = vmatpush1.bf16.msra.mxu0 0
        %1345 = vmatprep.subr.bf16.mxu0 0
        %1346 = vmatpush1.bf16.msra.mxu0 0
        %1347 = vmatprep.subr.bf16.mxu0 0
        %1348 = vmatpush1.bf16.msra.mxu0 %v1331
        %1349 = vmatprep.subr.bf16.mxu0 0
        %1350 = vmatpush2.bf16.msra.mxu0 0
        %1351 = vmatprep.subr.bf16.mxu0 0
        %1352 = vmatpush2.bf16.msra.mxu0 0
        %1353 = vmatprep.subr.bf16.mxu0 0
        %1354 = vmatpush2.bf16.msra.mxu0 0
        %1355 = vmatprep.subr.bf16.mxu0 0
        %1356 = vmatpush2.bf16.msra.mxu0 0
        %1357 = vmatprep.subr.bf16.mxu0 0
        %1358 = vmatpush2.bf16.msra.mxu0 0
        %1359 = vmatprep.subr.bf16.mxu0 0
        %1360 = vmatpush2.bf16.msra.mxu0 0
        %1361 = vmatprep.subr.bf16.mxu0 0
        %1362 = vmatpush2.bf16.msra.mxu0 0
        %1363 = vmatprep.subr.bf16.mxu0 0
        %1364 = vmatpush2.bf16.msra.mxu0 0
        %1365 = vmatprep.mubr.bf16.mxu0 0
        %1366 = vmatmul.mubr.bf16.gmra.mxu0 %v1328
        %v1367 = vpop.f32.mrf.mxu0
        %v1368 = vadd.f32 0.0, %v1367
        %v1369 = vpop.f32.mrf.mxu0
        %v1370 = vpop.f32.mrf.mxu0
        %v1371 = vpop.f32.mrf.mxu0
        %1372 = vdwg.mxu0
        %1374 = vrot.lane.b32.xlu0 %v1368, 16
        %v1375 = vpop.permute.xlu0 %1374
        %1377 = vst.msk [vmem:[#allocation2 + $0x8] sm:$0xff] %vm920, %v1375
        %1378 = vrot.lane.b32.xlu0 %v1038, 104
        %v1379 = vpop.permute.xlu0 %1378
        %1380 = vrot.lane.b32.xlu0 %v1038, 72
        %v1381 = vpop.permute.xlu0 %1380
        %v1383 = vsel %vm581, %v1379, 0
        %v1386 = vsel %vm581, %v1381, 0
        %1388 = vmatprep.subr.bf16.mxu0 0
        %1389 = vmatpush1.bf16.xpose.msra.mxu0 0
        %1390 = vmatprep.subr.bf16.mxu0 0
        %1391 = vmatpush1.bf16.xpose.msra.mxu0 0
        %1392 = vmatprep.subr.bf16.mxu0 0
        %1393 = vmatpush1.bf16.xpose.msra.mxu0 0
        %1394 = vmatprep.subr.bf16.mxu0 0
        %1395 = vmatpush1.bf16.xpose.msra.mxu0 0
        %1396 = vmatprep.subr.bf16.mxu0 0
        %1397 = vmatpush1.bf16.xpose.msra.mxu0 0
        %1398 = vmatprep.subr.bf16.mxu0 0
        %1399 = vmatpush1.bf16.xpose.msra.mxu0 0
        %1400 = vmatprep.subr.bf16.mxu0 0
        %1401 = vmatpush1.bf16.xpose.msra.mxu0 0
        %1402 = vmatprep.subr.bf16.mxu0 0
        %1403 = vmatpush1.bf16.xpose.msra.mxu0 %v1386
        %1404 = vmatprep.subr.bf16.mxu0 0
        %1405 = vmatpush2.bf16.xpose.msra.mxu0 0
        %1406 = vmatprep.subr.bf16.mxu0 0
        %1407 = vmatpush2.bf16.xpose.msra.mxu0 0
        %1408 = vmatprep.subr.bf16.mxu0 0
        %1409 = vmatpush2.bf16.xpose.msra.mxu0 0
        %1410 = vmatprep.subr.bf16.mxu0 0
        %1411 = vmatpush2.bf16.xpose.msra.mxu0 0
        %1412 = vmatprep.subr.bf16.mxu0 0
        %1413 = vmatpush2.bf16.xpose.msra.mxu0 0
        %1414 = vmatprep.subr.bf16.mxu0 0
        %1415 = vmatpush2.bf16.xpose.msra.mxu0 0
        %1416 = vmatprep.subr.bf16.mxu0 0
        %1417 = vmatpush2.bf16.xpose.msra.mxu0 0
        %1418 = vmatprep.subr.bf16.mxu0 0
        %1419 = vmatpush2.bf16.xpose.msra.mxu0 0
        %1420 = vmatprep.mubr.bf16.mxu0 0
        %1421 = vmatmul.mubr.bf16.gmra.mxu0 %v1383
        %v1422 = vpop.f32.mrf.mxu0
        %v1423 = vadd.f32 0.0, %v1422
        %v1424 = vpop.f32.mrf.mxu0
        %v1425 = vpop.f32.mrf.mxu0
        %v1426 = vpop.f32.mrf.mxu0
        %1427 = vdwg.mxu0
        %v1428 = vsel %vm581, %v1423, -inf
        %1429 = vmax.xlane.f32.xlu0 %v1428
        %v1430 = vpop.xlane.xlu0 %1429
        %v1431 = vsub.f32 %v1423, %v1430
        %v1432 = vmul.f32 %v1431, 1.442695
        %v1433 = vpow.pop %v1432
        %v1434 = vsel %vm581, %v1433, 0.0
        %1435 = vadd.xlane.f32.xlu0 %v1434
        %v1436 = vpop.xlane.xlu0 %1435
        %v1437 = vrcp.pop %v1436
        %v1438 = vmul.f32 %v1433, %v1437
        %v1439 = vpack.c.bf16 %v1438, %v1438
        %1440 = vrot.lane.b32.xlu0 %v1038, 40
        %v1441 = vpop.permute.xlu0 %1440
        %v1443 = vsel %vm581, %v1439, 0
        %v1446 = vsel %vm645, %v1441, 0
        %1448 = vmatprep.subr.bf16.mxu0 0
        %1449 = vmatpush1.bf16.msra.mxu0 0
        %1450 = vmatprep.subr.bf16.mxu0 0
        %1451 = vmatpush1.bf16.msra.mxu0 0
        %1452 = vmatprep.subr.bf16.mxu0 0
        %1453 = vmatpush1.bf16.msra.mxu0 0
        %1454 = vmatprep.subr.bf16.mxu0 0
        %1455 = vmatpush1.bf16.msra.mxu0 0
        %1456 = vmatprep.subr.bf16.mxu0 0
        %1457 = vmatpush1.bf16.msra.mxu0 0
        %1458 = vmatprep.subr.bf16.mxu0 0
        %1459 = vmatpush1.bf16.msra.mxu0 0
        %1460 = vmatprep.subr.bf16.mxu0 0
        %1461 = vmatpush1.bf16.msra.mxu0 0
        %1462 = vmatprep.subr.bf16.mxu0 0
        %1463 = vmatpush1.bf16.msra.mxu0 %v1446
        %1464 = vmatprep.subr.bf16.mxu0 0
        %1465 = vmatpush2.bf16.msra.mxu0 0
        %1466 = vmatprep.subr.bf16.mxu0 0
        %1467 = vmatpush2.bf16.msra.mxu0 0
        %1468 = vmatprep.subr.bf16.mxu0 0
        %1469 = vmatpush2.bf16.msra.mxu0 0
        %1470 = vmatprep.subr.bf16.mxu0 0
        %1471 = vmatpush2.bf16.msra.mxu0 0
        %1472 = vmatprep.subr.bf16.mxu0 0
        %1473 = vmatpush2.bf16.msra.mxu0 0
        %1474 = vmatprep.subr.bf16.mxu0 0
        %1475 = vmatpush2.bf16.msra.mxu0 0
        %1476 = vmatprep.subr.bf16.mxu0 0
        %1477 = vmatpush2.bf16.msra.mxu0 0
        %1478 = vmatprep.subr.bf16.mxu0 0
        %1479 = vmatpush2.bf16.msra.mxu0 0
        %1480 = vmatprep.mubr.bf16.mxu0 0
        %1481 = vmatmul.mubr.bf16.gmra.mxu0 %v1443
        %v1482 = vpop.f32.mrf.mxu0
        %v1483 = vadd.f32 0.0, %v1482
        %v1484 = vpop.f32.mrf.mxu0
        %v1485 = vpop.f32.mrf.mxu0
        %v1486 = vpop.f32.mrf.mxu0
        %1487 = vdwg.mxu0
        %1489 = vrot.lane.b32.xlu0 %v1483, 24
        %v1490 = vpop.permute.xlu0 %1489
        %1492 = vst.msk [vmem:[#allocation2 + $0x8] sm:$0xff] %vm1036, %v1490
        %v1493 = vld [vmem:[#allocation2] sm:$0xff]
        %v1494 = vld [vmem:[#allocation2 + $0x8] sm:$0xff]
        %v1495 = vpack.c.bf16 %v1494, %v1493
        %v1496 = vld [vmem:[%s3] sm:$0xf]
        %v1497 = vld [vmem:[%s3 + $0x4] sm:$0xf]
        %v1498 = vld [vmem:[%s3 + $0x8] sm:$0xf]
        %v1499 = vld [vmem:[%s3 + $0xc] sm:$0xf]
        %v1500 = vld [vmem:[#allocation6] sm:$0x1]
        %v1502 = vlaneseq
        %v1503 = vshrl.u32 %v1502, 7
        %v1504 = vsub.s32 0, %v1503
        %v1505 = vrot.slane %v1500, %v1504
        %v1511 = vunpack.c.l.b16 %v1496
        %v1512 = vunpack.c.l.b16 %v1497
        %v1513 = vunpack.c.l.b16 %v1498
        %v1514 = vunpack.c.l.b16 %v1499
        %v1515 = vpack.c.b16 %v1512, %v1511
        %v1516 = vpack.c.b16 %v1514, %v1513
        %v1520 = vsel %vm532, %v1495, 0
        %1522 = vmatprep.subr.bf16.mxu0 0
        %1523 = vmatpush1.bf16.msra.mxu0 0
        %1524 = vmatprep.subr.bf16.mxu0 0
        %1525 = vmatpush1.bf16.msra.mxu0 0
        %1526 = vmatprep.subr.bf16.mxu0 0
        %1527 = vmatpush1.bf16.msra.mxu0 0
        %1528 = vmatprep.subr.bf16.mxu0 0
        %1529 = vmatpush1.bf16.msra.mxu0 0
        %1530 = vmatprep.subr.bf16.mxu0 0
        %1531 = vmatpush1.bf16.msra.mxu0 0
        %1532 = vmatprep.subr.bf16.mxu0 0
        %1533 = vmatpush1.bf16.msra.mxu0 0
        %1534 = vmatprep.subr.bf16.mxu0 0
        %1535 = vmatpush1.bf16.msra.mxu0 %v1516
        %1536 = vmatprep.subr.bf16.mxu0 0
        %1537 = vmatpush1.bf16.msra.mxu0 %v1515
        %1538 = vmatprep.subr.bf16.mxu0 0
        %1539 = vmatpush2.bf16.msra.mxu0 0
        %1540 = vmatprep.subr.bf16.mxu0 0
        %1541 = vmatpush2.bf16.msra.mxu0 0
        %1542 = vmatprep.subr.bf16.mxu0 0
        %1543 = vmatpush2.bf16.msra.mxu0 0
        %1544 = vmatprep.subr.bf16.mxu0 0
        %1545 = vmatpush2.bf16.msra.mxu0 0
        %1546 = vmatprep.subr.bf16.mxu0 0
        %1547 = vmatpush2.bf16.msra.mxu0 0
        %1548 = vmatprep.subr.bf16.mxu0 0
        %1549 = vmatpush2.bf16.msra.mxu0 0
        %1550 = vmatprep.subr.bf16.mxu0 0
        %1551 = vmatpush2.bf16.msra.mxu0 0
        %1552 = vmatprep.subr.bf16.mxu0 0
        %1553 = vmatpush2.bf16.msra.mxu0 0
        %1554 = vmatprep.mubr.bf16.mxu0 0
        %1555 = vmatmul.mubr.bf16.gmra.mxu0 %v1520
        %v1556 = vpop.f32.mrf.mxu0
        %v1557 = vadd.f32 %v1505, %v1556
        %v1558 = vpop.f32.mrf.mxu0
        %v1559 = vpop.f32.mrf.mxu0
        %v1560 = vadd.f32 %v1505, %v1559
        %v1561 = vpop.f32.mrf.mxu0
        %1562 = vdwg.mxu0
        %v1563 = vadd.f32 %v506, %v1557
        %v1564 = vadd.f32 %v507, %v1560
        %v1565 = vsel %vm532, %v1563, 0.0
        %1566 = vadd.xlane.f32.xlu0 %v1565
        %v1567 = vpop.xlane.xlu0 %1566
        %v1568 = vsel %vm532, %v1564, 0.0
        %1569 = vadd.xlane.f32.xlu0 %v1568
        %v1570 = vpop.xlane.xlu0 %1569
        %v1571 = vrcp.pop 32.0
        %v1572 = vmul.f32 %v1567, %v1571
        %v1573 = vmul.f32 %v1570, %v1571
        %v1574 = vsub.f32 %v1563, %v1572
        %v1575 = vsub.f32 %v1564, %v1573
        %v1576 = vmul.f32 %v1574, %v1574
        %v1577 = vmul.f32 %v1575, %v1575
        %v1578 = vsel %vm532, %v1576, 0.0
        %1579 = vadd.xlane.f32.xlu0 %v1578
        %v1580 = vpop.xlane.xlu0 %1579
        %v1581 = vsel %vm532, %v1577, 0.0
        %1582 = vadd.xlane.f32.xlu0 %v1581
        %v1583 = vpop.xlane.xlu0 %1582
        %v1584 = vmul.f32 %v1580, %v1571
        %v1585 = vmul.f32 %v1583, %v1571
        %v1586 = vadd.f32 %v1584, 1e-05
        %v1587 = vadd.f32 %v1585, 1e-05
        %v1588 = vrsqrt.pop %v1586
        %v1589 = vrsqrt.pop %v1587
        %v1590 = vmul.f32 %v1574, %v1588
        %v1591 = vmul.f32 %v1575, %v1589
        %v1592 = vld [vmem:[#allocation8] sm:$0x1]
        %v1594 = vlaneseq
        %v1595 = vshrl.u32 %v1594, 7
        %v1596 = vsub.s32 0, %v1595
        %v1597 = vrot.slane %v1592, %v1596
        %v1599 = vmul.f32 %v1590, %v1597
        %v1600 = vmul.f32 %v1591, %v1597
        %v1601 = vld [vmem:[#allocation9] sm:$0x1]
        %v1603 = vlaneseq
        %v1604 = vshrl.u32 %v1603, 7
        %v1605 = vsub.s32 0, %v1604
        %v1606 = vrot.slane %v1601, %v1605
        %v1608 = vadd.f32 %v1599, %v1606
        %v1609 = vadd.f32 %v1600, %v1606
        %v1610 = vpack.c.bf16 %v1609, %v1608
        %v1611 = vld [vmem:[%s7] sm:$0xf]
        %v1612 = vld [vmem:[%s7 + $0x4] sm:$0xf]
        %v1613 = vld [vmem:[%s7 + $0x8] sm:$0xf]
        %v1614 = vld [vmem:[%s7 + $0xc] sm:$0xf]
        %v1615 = vld [vmem:[#allocation11] sm:$0x1]
        %v1617 = vlaneseq
        %v1618 = vshrl.u32 %v1617, 7
        %v1619 = vsub.s32 0, %v1618
        %v1620 = vrot.slane %v1615, %v1619
        %v1626 = vunpack.c.l.b16 %v1611
        %v1627 = vunpack.c.l.b16 %v1612
        %v1628 = vunpack.c.l.b16 %v1613
        %v1629 = vunpack.c.l.b16 %v1614
        %v1630 = vpack.c.b16 %v1627, %v1626
        %v1631 = vpack.c.b16 %v1629, %v1628
        %v1635 = vsel %vm532, %v1610, 0
        %1637 = vmatprep.subr.bf16.mxu0 0
        %1638 = vmatpush1.bf16.msra.mxu0 0
        %1639 = vmatprep.subr.bf16.mxu0 0
        %1640 = vmatpush1.bf16.msra.mxu0 0
        %1641 = vmatprep.subr.bf16.mxu0 0
        %1642 = vmatpush1.bf16.msra.mxu0 0
        %1643 = vmatprep.subr.bf16.mxu0 0
        %1644 = vmatpush1.bf16.msra.mxu0 0
        %1645 = vmatprep.subr.bf16.mxu0 0
        %1646 = vmatpush1.bf16.msra.mxu0 0
        %1647 = vmatprep.subr.bf16.mxu0 0
        %1648 = vmatpush1.bf16.msra.mxu0 0
        %1649 = vmatprep.subr.bf16.mxu0 0
        %1650 = vmatpush1.bf16.msra.mxu0 %v1631
        %1651 = vmatprep.subr.bf16.mxu0 0
        %1652 = vmatpush1.bf16.msra.mxu0 %v1630
        %1653 = vmatprep.subr.bf16.mxu0 0
        %1654 = vmatpush2.bf16.msra.mxu0 0
        %1655 = vmatprep.subr.bf16.mxu0 0
        %1656 = vmatpush2.bf16.msra.mxu0 0
        %1657 = vmatprep.subr.bf16.mxu0 0
        %1658 = vmatpush2.bf16.msra.mxu0 0
        %1659 = vmatprep.subr.bf16.mxu0 0
        %1660 = vmatpush2.bf16.msra.mxu0 0
        %1661 = vmatprep.subr.bf16.mxu0 0
        %1662 = vmatpush2.bf16.msra.mxu0 0
        %1663 = vmatprep.subr.bf16.mxu0 0
        %1664 = vmatpush2.bf16.msra.mxu0 0
        %1665 = vmatprep.subr.bf16.mxu0 0
        %1666 = vmatpush2.bf16.msra.mxu0 0
        %1667 = vmatprep.subr.bf16.mxu0 0
        %1668 = vmatpush2.bf16.msra.mxu0 0
        %1669 = vmatprep.mubr.bf16.mxu0 0
        %1670 = vmatmul.mubr.bf16.gmra.mxu0 %v1635
        %v1671 = vpop.f32.mrf.mxu0
        %v1672 = vadd.f32 %v1620, %v1671
        %v1673 = vpop.f32.mrf.mxu0
        %v1674 = vpop.f32.mrf.mxu0
        %v1675 = vadd.f32 %v1620, %v1674
        %v1676 = vpop.f32.mrf.mxu0
        %1677 = vdwg.mxu0
        %v1678 = vmax.f32 %v1672, 0.0
        %v1679 = vmax.f32 %v1675, 0.0
        %v1680 = vpack.c.bf16 %v1679, %v1678
        %v1681 = vld [vmem:[%s9] sm:$0xf]
        %v1682 = vld [vmem:[%s9 + $0x4] sm:$0xf]
        %v1683 = vld [vmem:[%s9 + $0x8] sm:$0xf]
        %v1684 = vld [vmem:[%s9 + $0xc] sm:$0xf]
        %v1685 = vld [vmem:[%s9 + $0x10] sm:$0xf]
        %v1686 = vld [vmem:[%s9 + $0x14] sm:$0xf]
        %v1687 = vld [vmem:[%s9 + $0x18] sm:$0xf]
        %v1688 = vld [vmem:[%s9 + $0x1c] sm:$0xf]
        %v1689 = vld [vmem:[%s9 + $0x20] sm:$0xf]
        %v1690 = vld [vmem:[%s9 + $0x24] sm:$0xf]
        %v1691 = vld [vmem:[%s9 + $0x28] sm:$0xf]
        %v1692 = vld [vmem:[%s9 + $0x2c] sm:$0xf]
        %v1693 = vld [vmem:[%s9 + $0x30] sm:$0xf]
        %v1694 = vld [vmem:[%s9 + $0x34] sm:$0xf]
        %v1695 = vld [vmem:[%s9 + $0x38] sm:$0xf]
        %v1696 = vld [vmem:[%s9 + $0x3c] sm:$0xf]
        %v1697 = vld [vmem:[%s10] sm:$0x1]
        %v1699 = vlaneseq
        %v1700 = vshrl.u32 %v1699, 7
        %v1701 = vsub.s32 0, %v1700
        %v1702 = vrot.slane %v1697, %v1701
        %v1720 = vunpack.c.l.b16 %v1681
        %v1721 = vunpack.c.l.b16 %v1682
        %v1722 = vunpack.c.l.b16 %v1683
        %v1723 = vunpack.c.l.b16 %v1684
        %v1724 = vunpack.c.l.b16 %v1685
        %v1725 = vunpack.c.l.b16 %v1686
        %v1726 = vunpack.c.l.b16 %v1687
        %v1727 = vunpack.c.l.b16 %v1688
        %v1728 = vunpack.c.l.b16 %v1689
        %v1729 = vunpack.c.l.b16 %v1690
        %v1730 = vunpack.c.l.b16 %v1691
        %v1731 = vunpack.c.l.b16 %v1692
        %v1732 = vunpack.c.l.b16 %v1693
        %v1733 = vunpack.c.l.b16 %v1694
        %v1734 = vunpack.c.l.b16 %v1695
        %v1735 = vunpack.c.l.b16 %v1696
        %v1736 = vpack.c.b16 %v1721, %v1720
        %v1737 = vpack.c.b16 %v1723, %v1722
        %v1738 = vpack.c.b16 %v1725, %v1724
        %v1739 = vpack.c.b16 %v1727, %v1726
        %v1740 = vpack.c.b16 %v1729, %v1728
        %v1741 = vpack.c.b16 %v1731, %v1730
        %v1742 = vpack.c.b16 %v1733, %v1732
        %v1743 = vpack.c.b16 %v1735, %v1734
        %1752 = vmatprep.subr.bf16.mxu0 0
        %1753 = vmatpush1.bf16.msra.mxu0 %v1743
        %1754 = vmatprep.subr.bf16.mxu0 0
        %1755 = vmatpush1.bf16.msra.mxu0 %v1742
        %1756 = vmatprep.subr.bf16.mxu0 0
        %1757 = vmatpush1.bf16.msra.mxu0 %v1741
        %1758 = vmatprep.subr.bf16.mxu0 0
        %1759 = vmatpush1.bf16.msra.mxu0 %v1740
        %1760 = vmatprep.subr.bf16.mxu0 0
        %1761 = vmatpush1.bf16.msra.mxu0 %v1739
        %1762 = vmatprep.subr.bf16.mxu0 0
        %1763 = vmatpush1.bf16.msra.mxu0 %v1738
        %1764 = vmatprep.subr.bf16.mxu0 0
        %1765 = vmatpush1.bf16.msra.mxu0 %v1737
        %1766 = vmatprep.subr.bf16.mxu0 0
        %1767 = vmatpush1.bf16.msra.mxu0 %v1736
        %1768 = vmatprep.subr.bf16.mxu0 0
        %1769 = vmatpush2.bf16.msra.mxu0 0
        %1770 = vmatprep.subr.bf16.mxu0 0
        %1771 = vmatpush2.bf16.msra.mxu0 0
        %1772 = vmatprep.subr.bf16.mxu0 0
        %1773 = vmatpush2.bf16.msra.mxu0 0
        %1774 = vmatprep.subr.bf16.mxu0 0
        %1775 = vmatpush2.bf16.msra.mxu0 0
        %1776 = vmatprep.subr.bf16.mxu0 0
        %1777 = vmatpush2.bf16.msra.mxu0 0
        %1778 = vmatprep.subr.bf16.mxu0 0
        %1779 = vmatpush2.bf16.msra.mxu0 0
        %1780 = vmatprep.subr.bf16.mxu0 0
        %1781 = vmatpush2.bf16.msra.mxu0 0
        %1782 = vmatprep.subr.bf16.mxu0 0
        %1783 = vmatpush2.bf16.msra.mxu0 0
        %1784 = vmatprep.mubr.bf16.mxu0 0
        %1785 = vmatmul.mubr.bf16.gmra.mxu0 %v1680
        %v1786 = vpop.f32.mrf.mxu0
        %v1787 = vadd.f32 %v1702, %v1786
        %v1788 = vpop.f32.mrf.mxu0
        %v1789 = vpop.f32.mrf.mxu0
        %v1790 = vadd.f32 %v1702, %v1789
        %v1791 = vpop.f32.mrf.mxu0
        %1792 = vdwg.mxu0
        %v1793 = vadd.f32 %v1608, %v1787
        %v1794 = vadd.f32 %v1609, %v1790
        %v1795 = vsel %vm532, %v1793, 0.0
        %1796 = vadd.xlane.f32.xlu0 %v1795
        %v1797 = vpop.xlane.xlu0 %1796
        %v1798 = vsel %vm532, %v1794, 0.0
        %1799 = vadd.xlane.f32.xlu0 %v1798
        %v1800 = vpop.xlane.xlu0 %1799
        %v1801 = vmul.f32 %v1797, %v1571
        %v1802 = vmul.f32 %v1800, %v1571
        %v1803 = vsub.f32 %v1793, %v1801
        %v1804 = vsub.f32 %v1794, %v1802
        %v1805 = vmul.f32 %v1803, %v1803
        %v1806 = vmul.f32 %v1804, %v1804
        %v1807 = vsel %vm532, %v1805, 0.0
        %1808 = vadd.xlane.f32.xlu0 %v1807
        %v1809 = vpop.xlane.xlu0 %1808
        %v1810 = vsel %vm532, %v1806, 0.0
        %1811 = vadd.xlane.f32.xlu0 %v1810
        %v1812 = vpop.xlane.xlu0 %1811
        %v1813 = vmul.f32 %v1809, %v1571
        %v1814 = vmul.f32 %v1812, %v1571
        %v1815 = vadd.f32 %v1813, 1e-05
        %v1816 = vadd.f32 %v1814, 1e-05
        %v1817 = vrsqrt.pop %v1815
        %v1818 = vrsqrt.pop %v1816
        %v1819 = vmul.f32 %v1803, %v1817
        %v1820 = vmul.f32 %v1804, %v1818
        %v1821 = vld [vmem:[%s11] sm:$0x1]
        %v1823 = vlaneseq
        %v1824 = vshrl.u32 %v1823, 7
        %v1825 = vsub.s32 0, %v1824
        %v1826 = vrot.slane %v1821, %v1825
        %v1828 = vmul.f32 %v1819, %v1826
        %v1829 = vmul.f32 %v1820, %v1826
        %v1830 = vld [vmem:[%s12] sm:$0x1]
        %v1832 = vlaneseq
        %v1833 = vshrl.u32 %v1832, 7
        %v1834 = vsub.s32 0, %v1833
        %v1835 = vrot.slane %v1830, %v1834
        %v1837 = vadd.f32 %v1828, %v1835
        %v1838 = vadd.f32 %v1829, %v1835
        %1839 = vst.msk [vmem:[%s497] sm:$0xff] %vm532, %v1837
        %1840 = vst.msk [vmem:[%s497 + $0x8] sm:$0xff] %vm532, %v1838
        %s1841 = sand.u32 %s316, 1
        %s1842 = scalar_lea.sflag [#allocation5], %s1841
        %s1843 = sand.u32 %s316, 1
        %s1844 = smul.addr %s1843, 16
        %s1845 = scalar_lea.vmem [#allocation12], %s1844
        // Predicated region
        $region93: #{tpu_custom_call.1} parent=71 // pred_check
          %p1846 = pneg %p326
        $region94: #{tpu_custom_call.1} parent=71 // pred_check_branch
          %1848 = sbr.rel (%p1846) target = $region96
        $region95: #{tpu_custom_call.1} parent=71 // pred_region
          %s1849 = smul.u32 2, %s30
          %s1851 = ssub.s32 256, 256
          %1852 = vsyncadd %s1842, %s1851
          %s1853 = smul.addr %s1849, 128
          %s1854 = scalar_lea.hbm %s13, %s1853
          %s1855 = sshll.u32 %s1845, 4
          %s1856 = int_to_ptr.vmem [resolvable:$true] %s1855
          %1861 = dma.vmem_to_hbm [thread:$0]  %s1856, 256, %s1854, %s1842, 128, 128, 8
        $region96: #{tpu_custom_call.1} parent=71 // pred_fallthru
          _
      $region72: #{tpu_custom_call.1} parent=5 // pred_fallthru
        _
      %p1862 = scmp.le.s32.totalorder 2, %s25
      // Predicated region
      $region97: #{tpu_custom_call.1} parent=5 // pred_check
        %p1863 = pneg %p1862
      $region98: #{tpu_custom_call.1} parent=5 // pred_check_branch
        %1865 = sbr.rel (%p1863) target = $region100
      $region99: #{tpu_custom_call.1} parent=5 // pred_region
        %s1866 = ssub.s32 %s25, 2
        // Predicated region
        $region101: #{tpu_custom_call.1} parent=99 // pred_check
          %p1867 = pneg %p332
        $region102: #{tpu_custom_call.1} parent=99 // pred_check_branch
          %1869 = sbr.rel (%p1867) target = $region104
        $region103: #{tpu_custom_call.1} parent=99 // pred_region
          %s1870 = sand.u32 %s317, 1
          %s1871 = scalar_lea.sflag [#allocation5], %s1870
          %s1872 = sand.u32 %s317, 1
          %s1873 = smul.addr %s1872, 16
          %s1874 = scalar_lea.vmem [#allocation12], %s1873
          %1875 = dma.done %s1871, 256
        $region104: #{tpu_custom_call.1} parent=99 // pred_fallthru
          _
      $region100: #{tpu_custom_call.1} parent=5 // pred_fallthru
        _
    $region6: #{tpu_custom_call.1} parent=1 // loop_footer
      %s29 = sadd.s32 1, %s25
    $region7: #{tpu_custom_call.1} parent=1 // loop_footer_branch
      %24 = sbr.rel target = $region3
    $region8: #{tpu_custom_call.1} parent=1 // loop_exit
      _
    %1876 = vsyncpa [#allocation4], 1
    %s1877 = scalar_lea.sflag [#allocation4], 1
    %1878 = vsyncpa %s1877, 1
    %1879 = vsyncpa [#allocation7], 1
    %1880 = vsyncpa [#allocation10], 1
    %1881 = vsyncpa [#allocation5], 1
    %s1882 = scalar_lea.sflag [#allocation5], 1
    %1883 = vsyncpa %s1882, 1

</llo_original>
